<compile_context>
chip_gen: v7x
topology: tpu7x:2x2x1
jax: 0.10.0
libtpu: 0.0.40
codegen_flags: <defaults>
</compile_context>

<pallas_src>
import math

import jax
import jax.numpy as jnp
from jax.experimental import pallas as pl
from jax.experimental.pallas import tpu as pltpu

N_LAYERS = 3


def _attention_block(h, wqkv, bqkv, wm, bm):
    """One SelfAttention block on a batch-block. h: (BB, L, E) f32."""
    BB, L, E = h.shape
    h2 = h.reshape(BB * L, E)

    # Fused Q/K/V projection: one MXU matmul with N = 3E instead of three N = E.
    qkv = jnp.dot(h2, wqkv, preferred_element_type=jnp.float32) + bqkv  # (BB*L, 3E)
    qkv = qkv.reshape(BB, L, 3 * E)
    q = qkv[:, :, 0 * E:1 * E]
    k = qkv[:, :, 1 * E:2 * E]
    v = qkv[:, :, 2 * E:3 * E]

    # scores[b, i, j] = q[b, i] . k[b, j]   (== torch.bmm(q, k.transpose(1, 2)))
    scores = jnp.einsum("bie,bje->bij", q, k, preferred_element_type=jnp.float32)

    # torch Softmax(dim=1) on (B, L, L) -> normalize over the i axis (axis=1).
    scores = scores - jnp.max(scores, axis=1, keepdims=True)
    e = jnp.exp(scores)
    alpha = e * pl.reciprocal(jnp.sum(e, axis=1, keepdims=True), approx=True)

    # t[b, j, :] = sum_i alpha[b, i, j] * v[b, i, :]   (== alpha^T @ v per batch)
    t = jnp.einsum("bij,bie->bje", alpha, v, preferred_element_type=jnp.float32)

    out = jnp.dot(t.reshape(BB * L, E), wm, preferred_element_type=jnp.float32) + bm
    return jnp.maximum(out, 0.0).reshape(BB, L, E)                      # relu


def module_kernel(x_ref, wqkv_ref, bqkv_ref, wm_ref, bm_ref, pooled_ref):
    # One grid step == one block of BB batch elements.
    h = x_ref[...].astype(jnp.float32)                                  # (BB, L, E)
    for l in range(N_LAYERS):                                           # static unroll
        h = _attention_block(h, wqkv_ref[l], bqkv_ref[l], wm_ref[l], bm_ref[l])
    # Lane-dense pooled sum; mean + final Linear(E, 1) are hoisted to the wrapper.
    pooled_ref[...] = jnp.sum(h, axis=1, keepdims=True)                 # (BB, 1, E)


def _pick_block_b(B, L):
    """Batch rows per grid step: aim for ~128 MXU rows (BB*L) while keeping at
    least 2 grid steps so v7x's two TensorCores both get work (no-op on v5e/v6e)."""
    if B < 2:
        return 1
    target = max(1, 128 // max(L, 1))
    return max(1, min(target, B // 2))


def module_forward(x, lengths, params):
    """Pallas forward of Module. x: (B, L, E) f32, lengths: (B,) f32 -> (B, 1)."""
    wq, bq, wk, bk, wv, bv, wm, bm, wf, bf = params
    B, L, E = x.shape
    x = x.astype(jnp.float32)

    # Fuse Q/K/V weights -> (N_LAYERS, E, 3E) so the kernel does one wide matmul/layer.
    wqkv = jnp.concatenate([wq, wk, wv], axis=-1)
    bqkv = jnp.concatenate([bq, bk, bv], axis=-1)

    BB = _pick_block_b(B, L)
    n_blocks = pl.cdiv(B, BB)
    Bp = n_blocks * BB
    if Bp != B:
        # Padded rows compute garbage that is sliced away below (cheaper than a
        # ragged grid at these sizes).
        x = jnp.pad(x, ((0, Bp - B), (0, 0), (0, 0)))

    # Weights are tiny (< 100 KB at E=32) and stay resident via constant index_maps.
    wqkv_spec = pl.BlockSpec((N_LAYERS, E, 3 * E), lambda b: (0, 0, 0))
    bqkv_spec = pl.BlockSpec((N_LAYERS, 1, 3 * E), lambda b: (0, 0, 0))
    wm_spec = pl.BlockSpec((N_LAYERS, E, E), lambda b: (0, 0, 0))
    bm_spec = pl.BlockSpec((N_LAYERS, 1, E), lambda b: (0, 0, 0))

    pooled = pl.pallas_call(
        module_kernel,
        out_shape=jax.ShapeDtypeStruct((Bp, 1, E), jnp.float32),
        grid_spec=pltpu.PrefetchScalarGridSpec(
            num_scalar_prefetch=0,
            grid=(n_blocks,),
            in_specs=[
                pl.BlockSpec((BB, L, E), lambda b: (b, 0, 0)),   # x block
                wqkv_spec, bqkv_spec,                            # fused Q/K/V
                wm_spec, bm_spec,                                # inner MLP
            ],
            out_specs=pl.BlockSpec((BB, 1, E), lambda b: (b, 0, 0)),
        ),
        compiler_params=pltpu.CompilerParams(dimension_semantics=("parallel",)),
    )(x, wqkv, bqkv, wm, bm)

    pooled = pooled.reshape(Bp, E)[:B]                            # (B, E)
    # Mean over the sequence and the final Linear(E, 1): degenerate N=1 GEMM,
    # left to XLA (fused trivially) rather than wasting an MXU push in-kernel.
    pooled = pooled / lengths.astype(jnp.float32).reshape(-1, 1)
    return pooled @ wf + bf                                       # (B, 1)


def reference_forward(x, lengths, params):
    """Pure-JAX reference mirroring the PyTorch forward exactly."""
    wq, bq, wk, bk, wv, bv, wm, bm, wf, bf = params
    h = x
    for l in range(N_LAYERS):
        q = h @ wq[l] + bq[l]
        k = h @ wk[l] + bk[l]
        v = h @ wv[l] + bv[l]
        scores = jnp.einsum("bie,bje->bij", q, k)
        alpha = jax.nn.softmax(scores, axis=1)                    # torch Softmax(dim=1)
        t = jnp.einsum("bij,bie->bje", alpha, v)                  # sum over dim=1
        h = jax.nn.relu(t @ wm[l] + bm[l])
    pooled = jnp.sum(h, axis=1) / lengths.reshape(-1, 1)
    return pooled @ wf + bf


def init_params(emb_size, key):
    # Deterministic init; MLP(in, out, []) == a single nn.Linear(in, out).
    ks = jax.random.split(key, 10)
    s = 1.0 / math.sqrt(emb_size)

    def u(k, shape):
        return jax.random.uniform(k, shape, minval=-s, maxval=s, dtype=jnp.float32)

    wq = u(ks[0], (N_LAYERS, emb_size, emb_size))
    bq = u(ks[1], (N_LAYERS, 1, emb_size))
    wk = u(ks[2], (N_LAYERS, emb_size, emb_size))
    bk = u(ks[3], (N_LAYERS, 1, emb_size))
    wv = u(ks[4], (N_LAYERS, emb_size, emb_size))
    bv = u(ks[5], (N_LAYERS, 1, emb_size))
    wm = u(ks[6], (N_LAYERS, emb_size, emb_size))
    bm = u(ks[7], (N_LAYERS, 1, emb_size))
    wf = u(ks[8], (emb_size, 1))
    bf = u(ks[9], (1, 1))
    return (wq, bq, wk, bk, wv, bv, wm, bm, wf, bf)


if __name__ == "__main__":
    B, L, E = 2, 8, 32
    key = jax.random.PRNGKey(0)
    kx, kp = jax.random.split(key)

    x = jax.random.normal(kx, (B, L, E), dtype=jnp.float32)
    # NOTE: like the PyTorch module, `len` only rescales the pooled sum; padded
    # positions are NOT masked out of the softmax / pooling (matches the spec).
    lengths = jnp.array([8.0, 6.0], dtype=jnp.float32)
    params = init_params(E, kp)

    out = jax.block_until_ready(module_forward(x, lengths, params))
    ref = jax.block_until_ready(reference_forward(x, lengths, params))

    assert out.shape == (B, 1)
    # Tolerance relaxed to 1e-3 because the softmax denominator uses the EUP
    # approximate reciprocal (pl.reciprocal(approx=True)).
    assert jnp.allclose(out, ref, rtol=1e-3, atol=1e-3), (out, ref)
    print("KERNEL_OK")
</pallas_src>

<mosaic_0001>
module attributes {stable_mosaic.version = 11 : i64} {
  func.func @module_kernel(%arg0: i32, %arg1: memref<1x8x32xf32, #tpu.memory_space<vmem>>, %arg2: memref<3x32x96xf32, #tpu.memory_space<vmem>>, %arg3: memref<3x1x96xf32, #tpu.memory_space<vmem>>, %arg4: memref<3x32x32xf32, #tpu.memory_space<vmem>>, %arg5: memref<3x1x32xf32, #tpu.memory_space<vmem>>, %arg6: memref<1x1x32xf32, #tpu.memory_space<vmem>>) attributes {dimension_semantics = [#tpu.dimension_semantics<parallel>], iteration_bounds = array<i64: 2>, scalar_prefetch = 0 : i64, scratch_operands = 0 : i64, tpu.core_type = #tpu.core_type<tc>, window_params = [{transform_indices = @transform_0, window_bounds = array<i64: 1, 8, 32>}, {pipeline_mode = #tpu.pipeline_mode<synchronous>, transform_indices = @transform_1, window_bounds = array<i64: 3, 32, 96>}, {pipeline_mode = #tpu.pipeline_mode<synchronous>, transform_indices = @transform_2, window_bounds = array<i64: 3, 1, 96>}, {pipeline_mode = #tpu.pipeline_mode<synchronous>, transform_indices = @transform_3, window_bounds = array<i64: 3, 32, 32>}, {pipeline_mode = #tpu.pipeline_mode<synchronous>, transform_indices = @transform_4, window_bounds = array<i64: 3, 1, 32>}, {transform_indices = @transform_5, window_bounds = array<i64: 1, 1, 32>}]} {
    %c0 = arith.constant 0 : index
    %c0_0 = arith.constant 0 : index
    %c0_1 = arith.constant 0 : index
    %0 = vector.load %arg1[%c0, %c0_0, %c0_1] : memref<1x8x32xf32, #tpu.memory_space<vmem>>, vector<1x8x32xf32>
    %c0_2 = arith.constant 0 : index
    %c0_3 = arith.constant 0 : index
    %c0_4 = arith.constant 0 : index
    %1 = vector.load %arg2[%c0_2, %c0_3, %c0_4] : memref<3x32x96xf32, #tpu.memory_space<vmem>>, vector<1x32x96xf32>
    %2 = vector.shape_cast %1 : vector<1x32x96xf32> to vector<32x96xf32>
    %c0_5 = arith.constant 0 : index
    %c0_6 = arith.constant 0 : index
    %c0_7 = arith.constant 0 : index
    %3 = vector.load %arg3[%c0_5, %c0_6, %c0_7] : memref<3x1x96xf32, #tpu.memory_space<vmem>>, vector<1x1x96xf32>
    %4 = vector.shape_cast %3 : vector<1x1x96xf32> to vector<1x96xf32>
    %c0_8 = arith.constant 0 : index
    %c0_9 = arith.constant 0 : index
    %c0_10 = arith.constant 0 : index
    %5 = vector.load %arg4[%c0_8, %c0_9, %c0_10] : memref<3x32x32xf32, #tpu.memory_space<vmem>>, vector<1x32x32xf32>
    %6 = vector.shape_cast %5 : vector<1x32x32xf32> to vector<32x32xf32>
    %c0_11 = arith.constant 0 : index
    %c0_12 = arith.constant 0 : index
    %c0_13 = arith.constant 0 : index
    %7 = vector.load %arg5[%c0_11, %c0_12, %c0_13] : memref<3x1x32xf32, #tpu.memory_space<vmem>>, vector<1x1x32xf32>
    %8 = vector.shape_cast %7 : vector<1x1x32xf32> to vector<1x32xf32>
    %9 = vector.shape_cast %0 : vector<1x8x32xf32> to vector<8x32xf32>
    %cst = arith.constant dense<0.000000e+00> : vector<8x96xf32>
    %10 = tpu.matmul %9, %2, %cst {dimension_numbers = #tpu.dot_dimension_numbers<[1], [0], [0], [1], [0, 0, 1, 1], [], []>} : vector<8x32xf32>, vector<32x96xf32>, vector<8x96xf32> -> vector<8x96xf32>
    %11 = vector.broadcast %4 : vector<1x96xf32> to vector<8x96xf32>
    %12 = arith.addf %10, %11 : vector<8x96xf32>
    %13 = vector.shape_cast %12 : vector<8x96xf32> to vector<1x8x96xf32>
    %14 = vector.extract_strided_slice %13 {offsets = [0, 0, 0], sizes = [1, 8, 32], strides = [1, 1, 1]} : vector<1x8x96xf32> to vector<1x8x32xf32>
    %15 = vector.extract_strided_slice %13 {offsets = [0, 0, 32], sizes = [1, 8, 32], strides = [1, 1, 1]} : vector<1x8x96xf32> to vector<1x8x32xf32>
    %16 = vector.extract_strided_slice %13 {offsets = [0, 0, 64], sizes = [1, 8, 32], strides = [1, 1, 1]} : vector<1x8x96xf32> to vector<1x8x32xf32>
    "tpu.trace_start"() <{level = 10 : i32, message = "bie,bje->bij"}> : () -> ()
    %cst_14 = arith.constant dense<0.000000e+00> : vector<1x8x8xf32>
    %17 = tpu.matmul %14, %15, %cst_14 {dimension_numbers = #tpu.dot_dimension_numbers<[2], [2], [1], [1], [0, 0, 0, 1, 1, 1], [0], [0]>} : vector<1x8x32xf32>, vector<1x8x32xf32>, vector<1x8x8xf32> -> vector<1x8x8xf32>
    "tpu.trace_stop"() : () -> ()
    %cst_15 = arith.constant dense<0xFF800000> : vector<1x8xf32>
    %18 = vector.multi_reduction <maximumf>, %17, %cst_15 [1] : vector<1x8x8xf32> to vector<1x8xf32>
    %19 = vector.shape_cast %18 : vector<1x8xf32> to vector<1x1x8xf32>
    %20 = vector.broadcast %19 : vector<1x1x8xf32> to vector<1x8x8xf32>
    %21 = arith.subf %17, %20 : vector<1x8x8xf32>
    %22 = math.exp %21 : vector<1x8x8xf32>
    %cst_16 = arith.constant dense<0.000000e+00> : vector<1x8xf32>
    %23 = vector.multi_reduction <add>, %22, %cst_16 [1] : vector<1x8x8xf32> to vector<1x8xf32>
    %24 = vector.shape_cast %23 : vector<1x8xf32> to vector<1x1x8xf32>
    %25 = tpu.reciprocal %24 {approx = true} : vector<1x1x8xf32> -> vector<1x1x8xf32>
    %26 = vector.broadcast %25 : vector<1x1x8xf32> to vector<1x8x8xf32>
    %27 = arith.mulf %22, %26 : vector<1x8x8xf32>
    "tpu.trace_start"() <{level = 10 : i32, message = "bij,bie->bje"}> : () -> ()
    %cst_17 = arith.constant dense<0.000000e+00> : vector<1x8x32xf32>
    %28 = tpu.matmul %27, %16, %cst_17 {dimension_numbers = #tpu.dot_dimension_numbers<[1], [1], [2], [2], [0, 0, 0, 2, 1, 2], [0], [0]>} : vector<1x8x8xf32>, vector<1x8x32xf32>, vector<1x8x32xf32> -> vector<1x8x32xf32>
    "tpu.trace_stop"() : () -> ()
    %29 = vector.shape_cast %28 : vector<1x8x32xf32> to vector<8x32xf32>
    %cst_18 = arith.constant dense<0.000000e+00> : vector<8x32xf32>
    %30 = tpu.matmul %29, %6, %cst_18 {dimension_numbers = #tpu.dot_dimension_numbers<[1], [0], [0], [1], [0, 0, 1, 1], [], []>} : vector<8x32xf32>, vector<32x32xf32>, vector<8x32xf32> -> vector<8x32xf32>
    %31 = vector.broadcast %8 : vector<1x32xf32> to vector<8x32xf32>
    %32 = arith.addf %30, %31 : vector<8x32xf32>
    %cst_19 = arith.constant 0.000000e+00 : f32
    %33 = vector.broadcast %cst_19 : f32 to vector<8x32xf32>
    %34 = arith.maximumf %32, %33 : vector<8x32xf32>
    %35 = vector.shape_cast %34 : vector<8x32xf32> to vector<1x8x32xf32>
    %c1 = arith.constant 1 : index
    %c0_20 = arith.constant 0 : index
    %c0_21 = arith.constant 0 : index
    %36 = vector.load %arg2[%c1, %c0_20, %c0_21] : memref<3x32x96xf32, #tpu.memory_space<vmem>>, vector<1x32x96xf32>
    %37 = vector.shape_cast %36 : vector<1x32x96xf32> to vector<32x96xf32>
    %c1_22 = arith.constant 1 : index
    %c0_23 = arith.constant 0 : index
    %c0_24 = arith.constant 0 : index
    %38 = vector.load %arg3[%c1_22, %c0_23, %c0_24] : memref<3x1x96xf32, #tpu.memory_space<vmem>>, vector<1x1x96xf32>
    %39 = vector.shape_cast %38 : vector<1x1x96xf32> to vector<1x96xf32>
    %c1_25 = arith.constant 1 : index
    %c0_26 = arith.constant 0 : index
    %c0_27 = arith.constant 0 : index
    %40 = vector.load %arg4[%c1_25, %c0_26, %c0_27] : memref<3x32x32xf32, #tpu.memory_space<vmem>>, vector<1x32x32xf32>
    %41 = vector.shape_cast %40 : vector<1x32x32xf32> to vector<32x32xf32>
    %c1_28 = arith.constant 1 : index
    %c0_29 = arith.constant 0 : index
    %c0_30 = arith.constant 0 : index
    %42 = vector.load %arg5[%c1_28, %c0_29, %c0_30] : memref<3x1x32xf32, #tpu.memory_space<vmem>>, vector<1x1x32xf32>
    %43 = vector.shape_cast %42 : vector<1x1x32xf32> to vector<1x32xf32>
    %44 = vector.shape_cast %35 : vector<1x8x32xf32> to vector<8x32xf32>
    %cst_31 = arith.constant dense<0.000000e+00> : vector<8x96xf32>
    %45 = tpu.matmul %44, %37, %cst_31 {dimension_numbers = #tpu.dot_dimension_numbers<[1], [0], [0], [1], [0, 0, 1, 1], [], []>} : vector<8x32xf32>, vector<32x96xf32>, vector<8x96xf32> -> vector<8x96xf32>
    %46 = vector.broadcast %39 : vector<1x96xf32> to vector<8x96xf32>
    %47 = arith.addf %45, %46 : vector<8x96xf32>
    %48 = vector.shape_cast %47 : vector<8x96xf32> to vector<1x8x96xf32>
    %49 = vector.extract_strided_slice %48 {offsets = [0, 0, 0], sizes = [1, 8, 32], strides = [1, 1, 1]} : vector<1x8x96xf32> to vector<1x8x32xf32>
    %50 = vector.extract_strided_slice %48 {offsets = [0, 0, 32], sizes = [1, 8, 32], strides = [1, 1, 1]} : vector<1x8x96xf32> to vector<1x8x32xf32>
    %51 = vector.extract_strided_slice %48 {offsets = [0, 0, 64], sizes = [1, 8, 32], strides = [1, 1, 1]} : vector<1x8x96xf32> to vector<1x8x32xf32>
    "tpu.trace_start"() <{level = 10 : i32, message = "bie,bje->bij"}> : () -> ()
    %cst_32 = arith.constant dense<0.000000e+00> : vector<1x8x8xf32>
    %52 = tpu.matmul %49, %50, %cst_32 {dimension_numbers = #tpu.dot_dimension_numbers<[2], [2], [1], [1], [0, 0, 0, 1, 1, 1], [0], [0]>} : vector<1x8x32xf32>, vector<1x8x32xf32>, vector<1x8x8xf32> -> vector<1x8x8xf32>
    "tpu.trace_stop"() : () -> ()
    %cst_33 = arith.constant dense<0xFF800000> : vector<1x8xf32>
    %53 = vector.multi_reduction <maximumf>, %52, %cst_33 [1] : vector<1x8x8xf32> to vector<1x8xf32>
    %54 = vector.shape_cast %53 : vector<1x8xf32> to vector<1x1x8xf32>
    %55 = vector.broadcast %54 : vector<1x1x8xf32> to vector<1x8x8xf32>
    %56 = arith.subf %52, %55 : vector<1x8x8xf32>
    %57 = math.exp %56 : vector<1x8x8xf32>
    %cst_34 = arith.constant dense<0.000000e+00> : vector<1x8xf32>
    %58 = vector.multi_reduction <add>, %57, %cst_34 [1] : vector<1x8x8xf32> to vector<1x8xf32>
    %59 = vector.shape_cast %58 : vector<1x8xf32> to vector<1x1x8xf32>
    %60 = tpu.reciprocal %59 {approx = true} : vector<1x1x8xf32> -> vector<1x1x8xf32>
    %61 = vector.broadcast %60 : vector<1x1x8xf32> to vector<1x8x8xf32>
    %62 = arith.mulf %57, %61 : vector<1x8x8xf32>
    "tpu.trace_start"() <{level = 10 : i32, message = "bij,bie->bje"}> : () -> ()
    %cst_35 = arith.constant dense<0.000000e+00> : vector<1x8x32xf32>
    %63 = tpu.matmul %62, %51, %cst_35 {dimension_numbers = #tpu.dot_dimension_numbers<[1], [1], [2], [2], [0, 0, 0, 2, 1, 2], [0], [0]>} : vector<1x8x8xf32>, vector<1x8x32xf32>, vector<1x8x32xf32> -> vector<1x8x32xf32>
    "tpu.trace_stop"() : () -> ()
    %64 = vector.shape_cast %63 : vector<1x8x32xf32> to vector<8x32xf32>
    %cst_36 = arith.constant dense<0.000000e+00> : vector<8x32xf32>
    %65 = tpu.matmul %64, %41, %cst_36 {dimension_numbers = #tpu.dot_dimension_numbers<[1], [0], [0], [1], [0, 0, 1, 1], [], []>} : vector<8x32xf32>, vector<32x32xf32>, vector<8x32xf32> -> vector<8x32xf32>
    %66 = vector.broadcast %43 : vector<1x32xf32> to vector<8x32xf32>
    %67 = arith.addf %65, %66 : vector<8x32xf32>
    %cst_37 = arith.constant 0.000000e+00 : f32
    %68 = vector.broadcast %cst_37 : f32 to vector<8x32xf32>
    %69 = arith.maximumf %67, %68 : vector<8x32xf32>
    %70 = vector.shape_cast %69 : vector<8x32xf32> to vector<1x8x32xf32>
    %c2 = arith.constant 2 : index
    %c0_38 = arith.constant 0 : index
    %c0_39 = arith.constant 0 : index
    %71 = vector.load %arg2[%c2, %c0_38, %c0_39] : memref<3x32x96xf32, #tpu.memory_space<vmem>>, vector<1x32x96xf32>
    %72 = vector.shape_cast %71 : vector<1x32x96xf32> to vector<32x96xf32>
    %c2_40 = arith.constant 2 : index
    %c0_41 = arith.constant 0 : index
    %c0_42 = arith.constant 0 : index
    %73 = vector.load %arg3[%c2_40, %c0_41, %c0_42] : memref<3x1x96xf32, #tpu.memory_space<vmem>>, vector<1x1x96xf32>
    %74 = vector.shape_cast %73 : vector<1x1x96xf32> to vector<1x96xf32>
    %c2_43 = arith.constant 2 : index
    %c0_44 = arith.constant 0 : index
    %c0_45 = arith.constant 0 : index
    %75 = vector.load %arg4[%c2_43, %c0_44, %c0_45] : memref<3x32x32xf32, #tpu.memory_space<vmem>>, vector<1x32x32xf32>
    %76 = vector.shape_cast %75 : vector<1x32x32xf32> to vector<32x32xf32>
    %c2_46 = arith.constant 2 : index
    %c0_47 = arith.constant 0 : index
    %c0_48 = arith.constant 0 : index
    %77 = vector.load %arg5[%c2_46, %c0_47, %c0_48] : memref<3x1x32xf32, #tpu.memory_space<vmem>>, vector<1x1x32xf32>
    %78 = vector.shape_cast %77 : vector<1x1x32xf32> to vector<1x32xf32>
    %79 = vector.shape_cast %70 : vector<1x8x32xf32> to vector<8x32xf32>
    %cst_49 = arith.constant dense<0.000000e+00> : vector<8x96xf32>
    %80 = tpu.matmul %79, %72, %cst_49 {dimension_numbers = #tpu.dot_dimension_numbers<[1], [0], [0], [1], [0, 0, 1, 1], [], []>} : vector<8x32xf32>, vector<32x96xf32>, vector<8x96xf32> -> vector<8x96xf32>
    %81 = vector.broadcast %74 : vector<1x96xf32> to vector<8x96xf32>
    %82 = arith.addf %80, %81 : vector<8x96xf32>
    %83 = vector.shape_cast %82 : vector<8x96xf32> to vector<1x8x96xf32>
    %84 = vector.extract_strided_slice %83 {offsets = [0, 0, 0], sizes = [1, 8, 32], strides = [1, 1, 1]} : vector<1x8x96xf32> to vector<1x8x32xf32>
    %85 = vector.extract_strided_slice %83 {offsets = [0, 0, 32], sizes = [1, 8, 32], strides = [1, 1, 1]} : vector<1x8x96xf32> to vector<1x8x32xf32>
    %86 = vector.extract_strided_slice %83 {offsets = [0, 0, 64], sizes = [1, 8, 32], strides = [1, 1, 1]} : vector<1x8x96xf32> to vector<1x8x32xf32>
    "tpu.trace_start"() <{level = 10 : i32, message = "bie,bje->bij"}> : () -> ()
    %cst_50 = arith.constant dense<0.000000e+00> : vector<1x8x8xf32>
    %87 = tpu.matmul %84, %85, %cst_50 {dimension_numbers = #tpu.dot_dimension_numbers<[2], [2], [1], [1], [0, 0, 0, 1, 1, 1], [0], [0]>} : vector<1x8x32xf32>, vector<1x8x32xf32>, vector<1x8x8xf32> -> vector<1x8x8xf32>
    "tpu.trace_stop"() : () -> ()
    %cst_51 = arith.constant dense<0xFF800000> : vector<1x8xf32>
    %88 = vector.multi_reduction <maximumf>, %87, %cst_51 [1] : vector<1x8x8xf32> to vector<1x8xf32>
    %89 = vector.shape_cast %88 : vector<1x8xf32> to vector<1x1x8xf32>
    %90 = vector.broadcast %89 : vector<1x1x8xf32> to vector<1x8x8xf32>
    %91 = arith.subf %87, %90 : vector<1x8x8xf32>
    %92 = math.exp %91 : vector<1x8x8xf32>
    %cst_52 = arith.constant dense<0.000000e+00> : vector<1x8xf32>
    %93 = vector.multi_reduction <add>, %92, %cst_52 [1] : vector<1x8x8xf32> to vector<1x8xf32>
    %94 = vector.shape_cast %93 : vector<1x8xf32> to vector<1x1x8xf32>
    %95 = tpu.reciprocal %94 {approx = true} : vector<1x1x8xf32> -> vector<1x1x8xf32>
    %96 = vector.broadcast %95 : vector<1x1x8xf32> to vector<1x8x8xf32>
    %97 = arith.mulf %92, %96 : vector<1x8x8xf32>
    "tpu.trace_start"() <{level = 10 : i32, message = "bij,bie->bje"}> : () -> ()
    %cst_53 = arith.constant dense<0.000000e+00> : vector<1x8x32xf32>
    %98 = tpu.matmul %97, %86, %cst_53 {dimension_numbers = #tpu.dot_dimension_numbers<[1], [1], [2], [2], [0, 0, 0, 2, 1, 2], [0], [0]>} : vector<1x8x8xf32>, vector<1x8x32xf32>, vector<1x8x32xf32> -> vector<1x8x32xf32>
    "tpu.trace_stop"() : () -> ()
    %99 = vector.shape_cast %98 : vector<1x8x32xf32> to vector<8x32xf32>
    %cst_54 = arith.constant dense<0.000000e+00> : vector<8x32xf32>
    %100 = tpu.matmul %99, %76, %cst_54 {dimension_numbers = #tpu.dot_dimension_numbers<[1], [0], [0], [1], [0, 0, 1, 1], [], []>} : vector<8x32xf32>, vector<32x32xf32>, vector<8x32xf32> -> vector<8x32xf32>
    %101 = vector.broadcast %78 : vector<1x32xf32> to vector<8x32xf32>
    %102 = arith.addf %100, %101 : vector<8x32xf32>
    %cst_55 = arith.constant 0.000000e+00 : f32
    %103 = vector.broadcast %cst_55 : f32 to vector<8x32xf32>
    %104 = arith.maximumf %102, %103 : vector<8x32xf32>
    %105 = vector.shape_cast %104 : vector<8x32xf32> to vector<1x8x32xf32>
    %cst_56 = arith.constant dense<0.000000e+00> : vector<1x32xf32>
    %106 = vector.multi_reduction <add>, %105, %cst_56 [1] : vector<1x8x32xf32> to vector<1x32xf32>
    %107 = vector.shape_cast %106 : vector<1x32xf32> to vector<1x1x32xf32>
    %c0_57 = arith.constant 0 : index
    %c0_58 = arith.constant 0 : index
    %c0_59 = arith.constant 0 : index
    %108 = vector.load %arg6[%c0_57, %c0_58, %c0_59] : memref<1x1x32xf32, #tpu.memory_space<vmem>>, vector<1x1x32xf32>
    tpu.vector_store %arg6[%c0_57, %c0_58, %c0_59], %107 {strides = array<i32>} : memref<1x1x32xf32, #tpu.memory_space<vmem>>, vector<1x1x32xf32>,
    return
  }
  func.func @transform_0(%arg0: i32) -> (i32, i32, i32) {
    %c0_i32 = arith.constant 0 : i32
    %c0_i32_0 = arith.constant 0 : i32
    %c0_i32_1 = arith.constant 0 : i32
    return %arg0, %c0_i32, %c0_i32_0 : i32, i32, i32
  }
  func.func @transform_1(%arg0: i32) -> (i32, i32, i32) {
    %c0_i32 = arith.constant 0 : i32
    %c0_i32_0 = arith.constant 0 : i32
    %c0_i32_1 = arith.constant 0 : i32
    %c0_i32_2 = arith.constant 0 : i32
    return %c0_i32, %c0_i32_0, %c0_i32_1 : i32, i32, i32
  }
  func.func @transform_2(%arg0: i32) -> (i32, i32, i32) {
    %c0_i32 = arith.constant 0 : i32
    %c0_i32_0 = arith.constant 0 : i32
    %c0_i32_1 = arith.constant 0 : i32
    %c0_i32_2 = arith.constant 0 : i32
    return %c0_i32, %c0_i32_0, %c0_i32_1 : i32, i32, i32
  }
  func.func @transform_3(%arg0: i32) -> (i32, i32, i32) {
    %c0_i32 = arith.constant 0 : i32
    %c0_i32_0 = arith.constant 0 : i32
    %c0_i32_1 = arith.constant 0 : i32
    %c0_i32_2 = arith.constant 0 : i32
    return %c0_i32, %c0_i32_0, %c0_i32_1 : i32, i32, i32
  }
  func.func @transform_4(%arg0: i32) -> (i32, i32, i32) {
    %c0_i32 = arith.constant 0 : i32
    %c0_i32_0 = arith.constant 0 : i32
    %c0_i32_1 = arith.constant 0 : i32
    %c0_i32_2 = arith.constant 0 : i32
    return %c0_i32, %c0_i32_0, %c0_i32_1 : i32, i32, i32
  }
  func.func @transform_5(%arg0: i32) -> (i32, i32, i32) {
    %c0_i32 = arith.constant 0 : i32
    %c0_i32_0 = arith.constant 0 : i32
    %c0_i32_1 = arith.constant 0 : i32
    return %arg0, %c0_i32, %c0_i32_0 : i32, i32, i32
  }
}

</mosaic_0001>

<llo_original>
// kernel: tpu_custom_call.1
$region0: #{tpu_custom_call.1}
  #allocation0 [shape = 'u32[]', space=smem, size = 0x4, offset = 0x4, fixed_abs, tag = 'smem constant byte address 0x4 - core index']
  #allocation1 [shape = 'u32[144,128]{1,0:T(1,128)}', space=vmem, size = 0x12000, scoped, tag = 'internal scratch']
  %s0 = inlined_call_operand.hbm [shape: f32[2,8,32], index: 0, kind: input, shape index: {}]
  %s1 = inlined_call_operand.hbm [shape: f32[3,32,96], index: 1, kind: input, shape index: {}]
  %s2 = inlined_call_operand.vmem [shape: f32[3,1,96], index: 2, kind: input, shape index: {}]
  %s3 = inlined_call_operand.hbm [shape: f32[3,32,32], index: 3, kind: input, shape index: {}]
  %s4 = inlined_call_operand.vmem [shape: f32[3,1,32], index: 4, kind: input, shape index: {}]
  %s5 = inlined_call_operand.hbm [shape: f32[2,1,32], index: 5, kind: output, shape index: {}]
  %s6 = sld [smem:[#allocation0]]
  $region65: #{tpu_custom_call.1} parent=0
    _
  %s8 = ssub.s32 1, %s6
  %s9 = scalar_select 0, %s8, %s6
  $region1: #{tpu_custom_call.1} parent=0
    #allocation2 [shape = 'u8[8192]{0}', space=vmem, size = 0x2000, scoped, tag = 'input window, operand 0']
    #allocation3 [shape = 's32[2]{0}', space=sflag, size = 0x8, scoped, tag = 'scoped memory for tpu_custom_call.1']
    #allocation4 [shape = 's32[2]{0}', space=sflag, size = 0x8, scoped, tag = 'scoped memory for tpu_custom_call.1']
    #allocation5 [shape = 'u8[49152]{0}', space=vmem, size = 0xc000, scoped, tag = 'input window, operand 1, single buffered']
    #allocation6 [shape = 's32[1]{0}', space=sflag, size = 0x4, scoped, tag = 'scoped memory for tpu_custom_call.1']
    #allocation7 [shape = 'u8[49152]{0}', space=vmem, size = 0xc000, scoped, tag = 'input window, operand 3, single buffered']
    #allocation8 [shape = 'u8[1024]{0}', space=vmem, size = 0x400, scoped, tag = 'output window, operand 0']
    %10 = vsyncpa [#allocation3], 0
    %s11 = scalar_lea.sflag [#allocation3], 1
    %12 = vsyncpa %s11, 0
    %13 = vsyncpa [#allocation6], 0
    %14 = vsyncpa [#allocation4], 0
    %s15 = scalar_lea.sflag [#allocation4], 1
    %16 = vsyncpa %s15, 0
    loop: start=0, step=1, limit=4
    $region2: #{tpu_custom_call.1} parent=1 // loop_pre_header
      _
    $region3: #{tpu_custom_call.1} parent=1 // loop_header
      %s18 = sphi 0, %s22
      %p19 = scmp.ge.s32.totalorder %s18, 4
      %s28 = sphi 0, %s30
      %s31 = sphi 0, %s28
      %s32 = sphi 0, %s31
      %s48 = sphi 0, %s32
      %s52 = sphi 0, %s52
      %s54 = sphi 0, %s52
      %s55 = sphi 0, %s54
      %s69 = sphi 0, %s55
      %s73 = sphi 0, %s73
      %s75 = sphi 0, %s73
      %s76 = sphi 0, %s75
      %s90 = sphi 0, %s76
      %s94 = sphi 0, %s94
      %s96 = sphi 0, %s94
      %s97 = sphi 0, %s96
      %s111 = sphi 0, %s97
      %s115 = sphi 0, %s115
      %s117 = sphi 0, %s115
      %s118 = sphi 0, %s117
      %s132 = sphi 0, %s118
      %s138 = sphi 0, %s140
      %s141 = sphi 0, %s138
      %s142 = sphi 0, %s141
      %s158 = sphi 0, %s142
    $region4: #{tpu_custom_call.1} parent=1 // loop_header_branch
      %21 = sbr.rel (%p19) target = $region8
    $region5: #{tpu_custom_call.1} parent=1 // loop_body
      %s23 = ssub.s32 %s18, 1
      %s24 = ssub.s32 %s18, 2
      %s25 = sadd.s32 %s18, 1
      %s26 = ssub.s32 %s18, %s25
      %p27 = scmp.eq.s32.totalorder %s26, 0
      %s29 = sadd.s32 %s28, 1
      %s30 = scalar_select %p27, %s28, %s29
      %p33 = pneg %p27
      %p34 = scmp.eq.s32.totalorder %s18, 1
      %p35 = por %p33, %p34
      %p36 = scmp.ne.s32.totalorder %s28, %s31
      %p37 = scmp.eq.s32.totalorder %s18, 0
      %p38 = por %p36, %p37
      %p39 = scmp.ne.s32.totalorder %s28, %s31
      %p40 = scmp.eq.s32.totalorder %s23, 1
      %p41 = por %p39, %p40
      %p42 = scmp.ne.s32.totalorder %s31, %s32
      %p43 = scmp.eq.s32.totalorder %s23, 0
      %p44 = por %p42, %p43
      %p45 = scmp.ne.s32.totalorder %s31, %s32
      %p46 = scmp.eq.s32.totalorder %s24, 1
      %p47 = por %p45, %p46
      %p49 = scmp.ne.s32.totalorder %s32, %s48
      %p50 = scmp.eq.s32.totalorder %s24, 0
      %p51 = por %p49, %p50
      %s53 = sadd.s32 %s52, 1
      %p56 = scmp.eq.s32.totalorder %s18, 1
      %p57 = scmp.ne.s32.totalorder %s52, %s54
      %p58 = scmp.eq.s32.totalorder %s18, 0
      %p59 = por %p57, %p58
      %p60 = scmp.ne.s32.totalorder %s52, %s54
      %p61 = scmp.eq.s32.totalorder %s23, 1
      %p62 = por %p60, %p61
      %p63 = scmp.ne.s32.totalorder %s54, %s55
      %p64 = scmp.eq.s32.totalorder %s23, 0
      %p65 = por %p63, %p64
      %p66 = scmp.ne.s32.totalorder %s54, %s55
      %p67 = scmp.eq.s32.totalorder %s24, 1
      %p68 = por %p66, %p67
      %p70 = scmp.ne.s32.totalorder %s55, %s69
      %p71 = scmp.eq.s32.totalorder %s24, 0
      %p72 = por %p70, %p71
      %s74 = sadd.s32 %s73, 1
      %p77 = scmp.eq.s32.totalorder %s18, 1
      %p78 = scmp.ne.s32.totalorder %s73, %s75
      %p79 = scmp.eq.s32.totalorder %s18, 0
      %p80 = por %p78, %p79
      %p81 = scmp.ne.s32.totalorder %s73, %s75
      %p82 = scmp.eq.s32.totalorder %s23, 1
      %p83 = por %p81, %p82
      %p84 = scmp.ne.s32.totalorder %s75, %s76
      %p85 = scmp.eq.s32.totalorder %s23, 0
      %p86 = por %p84, %p85
      %p87 = scmp.ne.s32.totalorder %s75, %s76
      %p88 = scmp.eq.s32.totalorder %s24, 1
      %p89 = por %p87, %p88
      %p91 = scmp.ne.s32.totalorder %s76, %s90
      %p92 = scmp.eq.s32.totalorder %s24, 0
      %p93 = por %p91, %p92
      %s95 = sadd.s32 %s94, 1
      %p98 = scmp.eq.s32.totalorder %s18, 1
      %p99 = scmp.ne.s32.totalorder %s94, %s96
      %p100 = scmp.eq.s32.totalorder %s18, 0
      %p101 = por %p99, %p100
      %p102 = scmp.ne.s32.totalorder %s94, %s96
      %p103 = scmp.eq.s32.totalorder %s23, 1
      %p104 = por %p102, %p103
      %p105 = scmp.ne.s32.totalorder %s96, %s97
      %p106 = scmp.eq.s32.totalorder %s23, 0
      %p107 = por %p105, %p106
      %p108 = scmp.ne.s32.totalorder %s96, %s97
      %p109 = scmp.eq.s32.totalorder %s24, 1
      %p110 = por %p108, %p109
      %p112 = scmp.ne.s32.totalorder %s97, %s111
      %p113 = scmp.eq.s32.totalorder %s24, 0
      %p114 = por %p112, %p113
      %s116 = sadd.s32 %s115, 1
      %p119 = scmp.eq.s32.totalorder %s18, 1
      %p120 = scmp.ne.s32.totalorder %s115, %s117
      %p121 = scmp.eq.s32.totalorder %s18, 0
      %p122 = por %p120, %p121
      %p123 = scmp.ne.s32.totalorder %s115, %s117
      %p124 = scmp.eq.s32.totalorder %s23, 1
      %p125 = por %p123, %p124
      %p126 = scmp.ne.s32.totalorder %s117, %s118
      %p127 = scmp.eq.s32.totalorder %s23, 0
      %p128 = por %p126, %p127
      %p129 = scmp.ne.s32.totalorder %s117, %s118
      %p130 = scmp.eq.s32.totalorder %s24, 1
      %p131 = por %p129, %p130
      %p133 = scmp.ne.s32.totalorder %s118, %s132
      %p134 = scmp.eq.s32.totalorder %s24, 0
      %p135 = por %p133, %p134
      %s136 = ssub.s32 %s18, %s25
      %p137 = scmp.eq.s32.totalorder %s136, 0
      %s139 = sadd.s32 %s138, 1
      %s140 = scalar_select %p137, %s138, %s139
      %p143 = pneg %p137
      %p144 = scmp.eq.s32.totalorder %s18, 1
      %p145 = por %p143, %p144
      %p146 = scmp.ne.s32.totalorder %s138, %s141
      %p147 = scmp.eq.s32.totalorder %s18, 0
      %p148 = por %p146, %p147
      %p149 = scmp.ne.s32.totalorder %s138, %s141
      %p150 = scmp.eq.s32.totalorder %s23, 1
      %p151 = por %p149, %p150
      %p152 = scmp.ne.s32.totalorder %s141, %s142
      %p153 = scmp.eq.s32.totalorder %s23, 0
      %p154 = por %p152, %p153
      %p155 = scmp.ne.s32.totalorder %s141, %s142
      %p156 = scmp.eq.s32.totalorder %s24, 1
      %p157 = por %p155, %p156
      %p159 = scmp.ne.s32.totalorder %s142, %s158
      %p160 = scmp.eq.s32.totalorder %s24, 0
      %p161 = por %p159, %p160
      %p162 = scmp.le.s32.totalorder 1, %s18
      %p163 = scmp.lt.s32.totalorder %s18, 3
      %p164 = pnand %p162, %p163
      %p165 = pneg %p164
      // Predicated region
      $region9: #{tpu_custom_call.1} parent=5 // pred_check
        _
      $region10: #{tpu_custom_call.1} parent=5 // pred_check_branch
        %167 = sbr.rel (%p164) target = $region12
      $region11: #{tpu_custom_call.1} parent=5 // pred_region
        %s168 = ssub.s32 %s18, 1
        // Predicated region
        $region13: #{tpu_custom_call.1} parent=11 // pred_check
          %p169 = pneg %p65
        $region14: #{tpu_custom_call.1} parent=11 // pred_check_branch
          %171 = sbr.rel (%p169) target = $region16
        $region15: #{tpu_custom_call.1} parent=11 // pred_region
          %s173 = ssub.s32 1536, 1536
          %174 = vsyncadd [#allocation6], %s173
          %s175 = sshll.u32 [#allocation5], 4
          %s176 = int_to_ptr.vmem [resolvable:$true] %s175
          %181 = dma.hbm_to_vmem [thread:$0]  %s1, 1536, %s176, [#allocation6], 128, 128, 8
        $region16: #{tpu_custom_call.1} parent=11 // pred_fallthru
          _
        // Predicated region
        $region17: #{tpu_custom_call.1} parent=11 // pred_check
          %p182 = pneg %p86
        $region18: #{tpu_custom_call.1} parent=11 // pred_check_branch
          %184 = sbr.rel (%p182) target = $region20
        $region19: #{tpu_custom_call.1} parent=11 // pred_region
          _
        $region20: #{tpu_custom_call.1} parent=11 // pred_fallthru
          _
        // Predicated region
        $region21: #{tpu_custom_call.1} parent=11 // pred_check
          %p185 = pneg %p107
        $region22: #{tpu_custom_call.1} parent=11 // pred_check_branch
          %187 = sbr.rel (%p185) target = $region24
        $region23: #{tpu_custom_call.1} parent=11 // pred_region
          %s189 = ssub.s32 1536, 1536
          %190 = vsyncadd [#allocation6], %s189
          %s191 = sshll.u32 [#allocation7], 4
          %s192 = int_to_ptr.vmem [resolvable:$true] %s191
          %197 = dma.hbm_to_vmem [thread:$0]  %s3, 1536, %s192, [#allocation6], 128, 128, 8
        $region24: #{tpu_custom_call.1} parent=11 // pred_fallthru
          _
        // Predicated region
        $region25: #{tpu_custom_call.1} parent=11 // pred_check
          %p198 = pneg %p128
        $region26: #{tpu_custom_call.1} parent=11 // pred_check_branch
          %200 = sbr.rel (%p198) target = $region28
        $region27: #{tpu_custom_call.1} parent=11 // pred_region
          _
        $region28: #{tpu_custom_call.1} parent=11 // pred_fallthru
          _
      $region12: #{tpu_custom_call.1} parent=5 // pred_fallthru
        _
      %p201 = scmp.lt.s32.totalorder %s18, 2
      // Predicated region
      $region29: #{tpu_custom_call.1} parent=5 // pred_check
        %p202 = pneg %p201
      $region30: #{tpu_custom_call.1} parent=5 // pred_check_branch
        %204 = sbr.rel (%p202) target = $region32
      $region31: #{tpu_custom_call.1} parent=5 // pred_region
        // Predicated region
        $region33: #{tpu_custom_call.1} parent=31 // pred_check
          %p205 = pneg %p38
        $region34: #{tpu_custom_call.1} parent=31 // pred_check_branch
          %207 = sbr.rel (%p205) target = $region36
        $region35: #{tpu_custom_call.1} parent=31 // pred_region
          %s208 = sand.u32 %s28, 1
          %s209 = scalar_lea.sflag [#allocation3], %s208
          %s210 = sand.u32 %s28, 1
          %s211 = smul.addr %s210, 8
          %s212 = scalar_lea.vmem [#allocation2], %s211
          %s214 = ssub.s32 128, 128
          %215 = vsyncadd %s209, %s214
          %s216 = smul.addr %s18, 128
          %s217 = scalar_lea.hbm %s0, %s216
          %s219 = sshll.u32 %s212, 4
          %s220 = int_to_ptr.vmem [resolvable:$true] %s219
          %222 = dma.hbm_to_vmem [thread:$0]  %s217, 128, %s220, %s209
        $region36: #{tpu_custom_call.1} parent=31 // pred_fallthru
          _
      $region32: #{tpu_custom_call.1} parent=5 // pred_fallthru
        _
      %p223 = scmp.le.s32.totalorder 1, %s18
      %p224 = scmp.lt.s32.totalorder %s18, 3
      %p225 = pnand %p223, %p224
      %p226 = pneg %p225
      // Predicated region
      $region37: #{tpu_custom_call.1} parent=5 // pred_check
        _
      $region38: #{tpu_custom_call.1} parent=5 // pred_check_branch
        %228 = sbr.rel (%p225) target = $region40
      $region39: #{tpu_custom_call.1} parent=5 // pred_region
        %s229 = ssub.s32 %s18, 1
        %s230 = sand.u32 %s31, 1
        %s231 = scalar_lea.sflag [#allocation3], %s230
        %s232 = sand.u32 %s31, 1
        %s233 = smul.addr %s232, 8
        %s234 = scalar_lea.vmem [#allocation2], %s233
        // Predicated region
        $region41: #{tpu_custom_call.1} parent=39 // pred_check
          %p235 = pneg %p44
        $region42: #{tpu_custom_call.1} parent=39 // pred_check_branch
          %237 = sbr.rel (%p235) target = $region44
        $region43: #{tpu_custom_call.1} parent=39 // pred_region
          %238 = dma.done %s231, 128
        $region44: #{tpu_custom_call.1} parent=39 // pred_fallthru
          _
        // Predicated region
        $region45: #{tpu_custom_call.1} parent=39 // pred_check
          %p239 = pneg %p65
        $region46: #{tpu_custom_call.1} parent=39 // pred_check_branch
          %241 = sbr.rel (%p239) target = $region48
        $region47: #{tpu_custom_call.1} parent=39 // pred_region
          %242 = dma.done [#allocation6], 1536
        $region48: #{tpu_custom_call.1} parent=39 // pred_fallthru
          _
        // Predicated region
        $region49: #{tpu_custom_call.1} parent=39 // pred_check
          %p243 = pneg %p107
        $region50: #{tpu_custom_call.1} parent=39 // pred_check_branch
          %245 = sbr.rel (%p243) target = $region52
        $region51: #{tpu_custom_call.1} parent=39 // pred_region
          %246 = dma.done [#allocation6], 1536
        $region52: #{tpu_custom_call.1} parent=39 // pred_fallthru
          _
        %s247 = sand.u32 %s31, 1
        %s248 = scalar_lea.sflag [#allocation3], %s247
        %s249 = sand.u32 %s31, 1
        %s250 = smul.addr %s249, 8
        %s251 = scalar_lea.vmem [#allocation2], %s250
        %p252 = pneg %p44
        %p253 = pneg %p41
        %p254 = pneg %p65
        %p255 = pneg %p62
        %p256 = pneg %p86
        %p257 = pneg %p83
        %p258 = pneg %p107
        %p259 = pneg %p104
        %p260 = pneg %p128
        %p261 = pneg %p125
        %p262 = pneg %p154
        %p263 = pneg %p151
        %s264 = sand.u32 %s141, 1
        %s265 = scalar_lea.sflag [#allocation4], %s264
        %s266 = sand.u32 %s141, 1
        %s267 = scalar_lea.vmem [#allocation8], %s266
        %v268 = vld [vmem:[%s234] sm:$0xff]
        %v269 = vld [vmem:[#allocation5] sm:$0xff]
        %v270 = vld [vmem:[#allocation5 + $0x8] sm:$0xff]
        %v271 = vld [vmem:[#allocation5 + $0x10] sm:$0xff]
        %v272 = vld [vmem:[#allocation5 + $0x18] sm:$0xff]
        %v273 = vld [vmem:[%s2] sm:$0x1]
        %v274 = vld [vmem:[#allocation7] sm:$0xff]
        %v275 = vld [vmem:[#allocation7 + $0x8] sm:$0xff]
        %v276 = vld [vmem:[#allocation7 + $0x10] sm:$0xff]
        %v277 = vld [vmem:[#allocation7 + $0x18] sm:$0xff]
        %v278 = vld [vmem:[%s4] sm:$0x1]
        %v280 = vlaneseq
        %v281 = vshrl.u32 %v280, 7
        %v282 = vsub.s32 0, %v281
        %v283 = vrot.slane %v273, %v282
        %vm285 = vcmask 261120
        %v287 = vsel %vm285, %v268, 0
        %289 = vmatprep.subr.mxu0 0.0
        %290 = vmatpush1.msra.mxu0 %v269
        %291 = vmatprep.subr.mxu0 0.0
        %292 = vmatpush1.msra.mxu0 %v270
        %293 = vmatprep.subr.mxu0 0.0
        %294 = vmatpush1.msra.mxu0 %v271
        %295 = vmatprep.subr.mxu0 0.0
        %296 = vmatpush1.msra.mxu0 %v272
        %297 = vmatprep.subr.mxu0 0.0
        %298 = vmatpush1.msra.mxu0 0.0
        %299 = vmatprep.subr.mxu0 0.0
        %300 = vmatpush1.msra.mxu0 0.0
        %301 = vmatprep.subr.mxu0 0.0
        %302 = vmatpush1.msra.mxu0 0.0
        %303 = vmatprep.subr.mxu0 0.0
        %304 = vmatpush1.msra.mxu0 0.0
        %305 = vmatprep.subr.mxu0 0.0
        %306 = vmatpush1.msra.mxu0 0.0
        %307 = vmatprep.subr.mxu0 0.0
        %308 = vmatpush1.msra.mxu0 0.0
        %309 = vmatprep.subr.mxu0 0.0
        %310 = vmatpush1.msra.mxu0 0.0
        %311 = vmatprep.subr.mxu0 0.0
        %312 = vmatpush1.msra.mxu0 0.0
        %313 = vmatprep.subr.mxu0 0.0
        %314 = vmatpush1.msra.mxu0 0.0
        %315 = vmatprep.subr.mxu0 0.0
        %316 = vmatpush1.msra.mxu0 0.0
        %317 = vmatprep.subr.mxu0 0.0
        %318 = vmatpush1.msra.mxu0 0.0
        %319 = vmatprep.subr.mxu0 0.0
        %320 = vmatpush1.msra.mxu0 0.0
        %321 = vmatprep.subr.mxu0 0.0
        %322 = vmatpush1.msra.mxu0 0.0
        %323 = vmatprep.subr.mxu0 0.0
        %324 = vmatpush1.msra.mxu0 0.0
        %325 = vmatprep.subr.mxu0 0.0
        %326 = vmatpush1.msra.mxu0 0.0
        %327 = vmatprep.subr.mxu0 0.0
        %328 = vmatpush1.msra.mxu0 0.0
        %329 = vmatprep.subr.mxu0 0.0
        %330 = vmatpush1.msra.mxu0 0.0
        %331 = vmatprep.subr.mxu0 0.0
        %332 = vmatpush1.msra.mxu0 0.0
        %333 = vmatprep.subr.mxu0 0.0
        %334 = vmatpush1.msra.mxu0 0.0
        %335 = vmatprep.subr.mxu0 0.0
        %336 = vmatpush1.msra.mxu0 0.0
        %337 = vmatprep.subr.mxu0 0.0
        %338 = vmatpush1.msra.mxu0 0.0
        %339 = vmatprep.subr.mxu0 0.0
        %340 = vmatpush1.msra.mxu0 0.0
        %341 = vmatprep.subr.mxu0 0.0
        %342 = vmatpush1.msra.mxu0 0.0
        %343 = vmatprep.subr.mxu0 0.0
        %344 = vmatpush1.msra.mxu0 0.0
        %345 = vmatprep.subr.mxu0 0.0
        %346 = vmatpush1.msra.mxu0 0.0
        %347 = vmatprep.subr.mxu0 0.0
        %348 = vmatpush1.msra.mxu0 0.0
        %349 = vmatprep.subr.mxu0 0.0
        %350 = vmatpush1.msra.mxu0 0.0
        %351 = vmatprep.subr.mxu0 0.0
        %352 = vmatpush1.msra.mxu0 0.0
        %353 = vmatprep.mubr.f32.mxu0 0.0
        %354 = vmatmul.mubr.f32.gmra.mrb[0].mxu0 %v287
        %v355 = vpop.f32.mrb[0].mxu0
        %v356 = vadd.f32 %v283, %v355
        %v357 = vpop.f32.mrb[0].mxu0
        %358 = vdwg.mxu0
        %360 = vrot.lane.b32.xlu0 %v356, 96
        %v361 = vpop.permute.xlu0 %360
        %v362 = vsel %vm285, %v356, 0
        %v364 = vsel %vm285, %v361, 0
        %366 = vmatprep.subr.mxu0 0.0
        %367 = vmatpush1.xpose.msra.mxu0 %v364
        %368 = vmatprep.subr.mxu0 0.0
        %369 = vmatpush1.xpose.msra.mxu0 0.0
        %370 = vmatprep.subr.mxu0 0.0
        %371 = vmatpush1.xpose.msra.mxu0 0.0
        %372 = vmatprep.subr.mxu0 0.0
        %373 = vmatpush1.xpose.msra.mxu0 0.0
        %374 = vmatprep.subr.mxu0 0.0
        %375 = vmatpush1.xpose.msra.mxu0 0.0
        %376 = vmatprep.subr.mxu0 0.0
        %377 = vmatpush1.xpose.msra.mxu0 0.0
        %378 = vmatprep.subr.mxu0 0.0
        %379 = vmatpush1.xpose.msra.mxu0 0.0
        %380 = vmatprep.subr.mxu0 0.0
        %381 = vmatpush1.xpose.msra.mxu0 0.0
        %382 = vmatprep.subr.mxu0 0.0
        %383 = vmatpush1.xpose.msra.mxu0 0.0
        %384 = vmatprep.subr.mxu0 0.0
        %385 = vmatpush1.xpose.msra.mxu0 0.0
        %386 = vmatprep.subr.mxu0 0.0
        %387 = vmatpush1.xpose.msra.mxu0 0.0
        %388 = vmatprep.subr.mxu0 0.0
        %389 = vmatpush1.xpose.msra.mxu0 0.0
        %390 = vmatprep.subr.mxu0 0.0
        %391 = vmatpush1.xpose.msra.mxu0 0.0
        %392 = vmatprep.subr.mxu0 0.0
        %393 = vmatpush1.xpose.msra.mxu0 0.0
        %394 = vmatprep.subr.mxu0 0.0
        %395 = vmatpush1.xpose.msra.mxu0 0.0
        %396 = vmatprep.subr.mxu0 0.0
        %397 = vmatpush1.xpose.msra.mxu0 0.0
        %398 = vmatprep.subr.mxu0 0.0
        %399 = vmatpush1.xpose.msra.mxu0 0.0
        %400 = vmatprep.subr.mxu0 0.0
        %401 = vmatpush1.xpose.msra.mxu0 0.0
        %402 = vmatprep.subr.mxu0 0.0
        %403 = vmatpush1.xpose.msra.mxu0 0.0
        %404 = vmatprep.subr.mxu0 0.0
        %405 = vmatpush1.xpose.msra.mxu0 0.0
        %406 = vmatprep.subr.mxu0 0.0
        %407 = vmatpush1.xpose.msra.mxu0 0.0
        %408 = vmatprep.subr.mxu0 0.0
        %409 = vmatpush1.xpose.msra.mxu0 0.0
        %410 = vmatprep.subr.mxu0 0.0
        %411 = vmatpush1.xpose.msra.mxu0 0.0
        %412 = vmatprep.subr.mxu0 0.0
        %413 = vmatpush1.xpose.msra.mxu0 0.0
        %414 = vmatprep.subr.mxu0 0.0
        %415 = vmatpush1.xpose.msra.mxu0 0.0
        %416 = vmatprep.subr.mxu0 0.0
        %417 = vmatpush1.xpose.msra.mxu0 0.0
        %418 = vmatprep.subr.mxu0 0.0
        %419 = vmatpush1.xpose.msra.mxu0 0.0
        %420 = vmatprep.subr.mxu0 0.0
        %421 = vmatpush1.xpose.msra.mxu0 0.0
        %422 = vmatprep.subr.mxu0 0.0
        %423 = vmatpush1.xpose.msra.mxu0 0.0
        %424 = vmatprep.subr.mxu0 0.0
        %425 = vmatpush1.xpose.msra.mxu0 0.0
        %426 = vmatprep.subr.mxu0 0.0
        %427 = vmatpush1.xpose.msra.mxu0 0.0
        %428 = vmatprep.subr.mxu0 0.0
        %429 = vmatpush1.xpose.msra.mxu0 0.0
        %430 = vmatprep.mubr.f32.mxu0 0.0
        %431 = vmatmul.mubr.f32.gmra.mrb[0].mxu0 %v362
        %v432 = vpop.f32.mrb[0].mxu0
        %v433 = vadd.f32 0.0, %v432
        %v434 = vpop.f32.mrb[0].mxu0
        %435 = vdwg.mxu0
        %vm436 = vcmask 64512
        %v437 = vsel %vm436, %v433, -inf
        %v438 = vrot.slane %v437, 4
        %v439 = vmax.f32 %v437, %v438
        %v440 = vrot.slane %v439, 2
        %v441 = vmax.f32 %v439, %v440
        %v442 = vrot.slane %v441, 1
        %v443 = vmax.f32 %v441, %v442
        %v444 = vsub.f32 %v433, %v443
        %v445 = vmul.f32 %v444, 1.442695
        %v446 = vpow.pop %v445
        %v447 = vsel %vm436, %v446, 0.0
        %v448 = vrot.slane %v447, 4
        %v449 = vadd.f32 %v447, %v448
        %v450 = vrot.slane %v449, 2
        %v451 = vadd.f32 %v449, %v450
        %v452 = vrot.slane %v451, 1
        %v453 = vadd.f32 %v451, %v452
        %v454 = vrcp.pop %v453
        %v455 = vmul.f32 %v446, %v454
        %456 = vxpose.xlu0.b32.start [1/16] %v455, 128
        %457 = vxpose.xlu0.b32.cont [2/16] 0.0, 128
        %458 = vxpose.xlu0.b32.cont [3/16] 0.0, 128
        %459 = vxpose.xlu0.b32.cont [4/16] 0.0, 128
        %460 = vxpose.xlu0.b32.cont [5/16] 0.0, 128
        %461 = vxpose.xlu0.b32.cont [6/16] 0.0, 128
        %462 = vxpose.xlu0.b32.cont [7/16] 0.0, 128
        %463 = vxpose.xlu0.b32.cont [8/16] 0.0, 128
        %464 = vxpose.xlu0.b32.cont [9/16] 0.0, 128
        %465 = vxpose.xlu0.b32.cont [10/16] 0.0, 128
        %466 = vxpose.xlu0.b32.cont [11/16] 0.0, 128
        %467 = vxpose.xlu0.b32.cont [12/16] 0.0, 128
        %468 = vxpose.xlu0.b32.cont [13/16] 0.0, 128
        %469 = vxpose.xlu0.b32.cont [14/16] 0.0, 128
        %470 = vxpose.xlu0.b32.cont [15/16] 0.0, 128
        %471 = vxpose.xlu0.b32.end [16/16] 0.0, 128
        %v472 = vpop.trf.xlu0
        %v473 = vpop.trf.xlu0
        %v474 = vpop.trf.xlu0
        %v475 = vpop.trf.xlu0
        %v476 = vpop.trf.xlu0
        %v477 = vpop.trf.xlu0
        %v478 = vpop.trf.xlu0
        %v479 = vpop.trf.xlu0
        %v480 = vpop.trf.xlu0
        %v481 = vpop.trf.xlu0
        %v482 = vpop.trf.xlu0
        %v483 = vpop.trf.xlu0
        %v484 = vpop.trf.xlu0
        %v485 = vpop.trf.xlu0
        %v486 = vpop.trf.xlu0
        %v487 = vpop.trf.xlu0
        %488 = vrot.lane.b32.xlu0 %v356, 64
        %v489 = vpop.permute.xlu0 %488
        %v492 = vsel %vm436, %v472, 0
        %494 = vmatprep.subr.mxu0 0.0
        %495 = vmatpush1.msra.mxu0 %v489
        %496 = vmatprep.subr.mxu0 0.0
        %497 = vmatpush1.msra.mxu0 0.0
        %498 = vmatprep.subr.mxu0 0.0
        %499 = vmatpush1.msra.mxu0 0.0
        %500 = vmatprep.subr.mxu0 0.0
        %501 = vmatpush1.msra.mxu0 0.0
        %502 = vmatprep.subr.mxu0 0.0
        %503 = vmatpush1.msra.mxu0 0.0
        %504 = vmatprep.subr.mxu0 0.0
        %505 = vmatpush1.msra.mxu0 0.0
        %506 = vmatprep.subr.mxu0 0.0
        %507 = vmatpush1.msra.mxu0 0.0
        %508 = vmatprep.subr.mxu0 0.0
        %509 = vmatpush1.msra.mxu0 0.0
        %510 = vmatprep.subr.mxu0 0.0
        %511 = vmatpush1.msra.mxu0 0.0
        %512 = vmatprep.subr.mxu0 0.0
        %513 = vmatpush1.msra.mxu0 0.0
        %514 = vmatprep.subr.mxu0 0.0
        %515 = vmatpush1.msra.mxu0 0.0
        %516 = vmatprep.subr.mxu0 0.0
        %517 = vmatpush1.msra.mxu0 0.0
        %518 = vmatprep.subr.mxu0 0.0
        %519 = vmatpush1.msra.mxu0 0.0
        %520 = vmatprep.subr.mxu0 0.0
        %521 = vmatpush1.msra.mxu0 0.0
        %522 = vmatprep.subr.mxu0 0.0
        %523 = vmatpush1.msra.mxu0 0.0
        %524 = vmatprep.subr.mxu0 0.0
        %525 = vmatpush1.msra.mxu0 0.0
        %526 = vmatprep.subr.mxu0 0.0
        %527 = vmatpush1.msra.mxu0 0.0
        %528 = vmatprep.subr.mxu0 0.0
        %529 = vmatpush1.msra.mxu0 0.0
        %530 = vmatprep.subr.mxu0 0.0
        %531 = vmatpush1.msra.mxu0 0.0
        %532 = vmatprep.subr.mxu0 0.0
        %533 = vmatpush1.msra.mxu0 0.0
        %534 = vmatprep.subr.mxu0 0.0
        %535 = vmatpush1.msra.mxu0 0.0
        %536 = vmatprep.subr.mxu0 0.0
        %537 = vmatpush1.msra.mxu0 0.0
        %538 = vmatprep.subr.mxu0 0.0
        %539 = vmatpush1.msra.mxu0 0.0
        %540 = vmatprep.subr.mxu0 0.0
        %541 = vmatpush1.msra.mxu0 0.0
        %542 = vmatprep.subr.mxu0 0.0
        %543 = vmatpush1.msra.mxu0 0.0
        %544 = vmatprep.subr.mxu0 0.0
        %545 = vmatpush1.msra.mxu0 0.0
        %546 = vmatprep.subr.mxu0 0.0
        %547 = vmatpush1.msra.mxu0 0.0
        %548 = vmatprep.subr.mxu0 0.0
        %549 = vmatpush1.msra.mxu0 0.0
        %550 = vmatprep.subr.mxu0 0.0
        %551 = vmatpush1.msra.mxu0 0.0
        %552 = vmatprep.subr.mxu0 0.0
        %553 = vmatpush1.msra.mxu0 0.0
        %554 = vmatprep.subr.mxu0 0.0
        %555 = vmatpush1.msra.mxu0 0.0
        %556 = vmatprep.subr.mxu0 0.0
        %557 = vmatpush1.msra.mxu0 0.0
        %558 = vmatprep.mubr.f32.mxu0 0.0
        %559 = vmatmul.mubr.f32.gmra.mrb[0].mxu0 %v492
        %v560 = vpop.f32.mrb[0].mxu0
        %v561 = vadd.f32 0.0, %v560
        %v562 = vpop.f32.mrb[0].mxu0
        %563 = vdwg.mxu0
        %v565 = vlaneseq
        %v566 = vshrl.u32 %v565, 7
        %v567 = vsub.s32 0, %v566
        %v568 = vrot.slane %v278, %v567
        %v571 = vsel %vm285, %v561, 0
        %573 = vmatprep.subr.mxu0 0.0
        %574 = vmatpush1.msra.mxu0 %v274
        %575 = vmatprep.subr.mxu0 0.0
        %576 = vmatpush1.msra.mxu0 %v275
        %577 = vmatprep.subr.mxu0 0.0
        %578 = vmatpush1.msra.mxu0 %v276
        %579 = vmatprep.subr.mxu0 0.0
        %580 = vmatpush1.msra.mxu0 %v277
        %581 = vmatprep.subr.mxu0 0.0
        %582 = vmatpush1.msra.mxu0 0.0
        %583 = vmatprep.subr.mxu0 0.0
        %584 = vmatpush1.msra.mxu0 0.0
        %585 = vmatprep.subr.mxu0 0.0
        %586 = vmatpush1.msra.mxu0 0.0
        %587 = vmatprep.subr.mxu0 0.0
        %588 = vmatpush1.msra.mxu0 0.0
        %589 = vmatprep.subr.mxu0 0.0
        %590 = vmatpush1.msra.mxu0 0.0
        %591 = vmatprep.subr.mxu0 0.0
        %592 = vmatpush1.msra.mxu0 0.0
        %593 = vmatprep.subr.mxu0 0.0
        %594 = vmatpush1.msra.mxu0 0.0
        %595 = vmatprep.subr.mxu0 0.0
        %596 = vmatpush1.msra.mxu0 0.0
        %597 = vmatprep.subr.mxu0 0.0
        %598 = vmatpush1.msra.mxu0 0.0
        %599 = vmatprep.subr.mxu0 0.0
        %600 = vmatpush1.msra.mxu0 0.0
        %601 = vmatprep.subr.mxu0 0.0
        %602 = vmatpush1.msra.mxu0 0.0
        %603 = vmatprep.subr.mxu0 0.0
        %604 = vmatpush1.msra.mxu0 0.0
        %605 = vmatprep.subr.mxu0 0.0
        %606 = vmatpush1.msra.mxu0 0.0
        %607 = vmatprep.subr.mxu0 0.0
        %608 = vmatpush1.msra.mxu0 0.0
        %609 = vmatprep.subr.mxu0 0.0
        %610 = vmatpush1.msra.mxu0 0.0
        %611 = vmatprep.subr.mxu0 0.0
        %612 = vmatpush1.msra.mxu0 0.0
        %613 = vmatprep.subr.mxu0 0.0
        %614 = vmatpush1.msra.mxu0 0.0
        %615 = vmatprep.subr.mxu0 0.0
        %616 = vmatpush1.msra.mxu0 0.0
        %617 = vmatprep.subr.mxu0 0.0
        %618 = vmatpush1.msra.mxu0 0.0
        %619 = vmatprep.subr.mxu0 0.0
        %620 = vmatpush1.msra.mxu0 0.0
        %621 = vmatprep.subr.mxu0 0.0
        %622 = vmatpush1.msra.mxu0 0.0
        %623 = vmatprep.subr.mxu0 0.0
        %624 = vmatpush1.msra.mxu0 0.0
        %625 = vmatprep.subr.mxu0 0.0
        %626 = vmatpush1.msra.mxu0 0.0
        %627 = vmatprep.subr.mxu0 0.0
        %628 = vmatpush1.msra.mxu0 0.0
        %629 = vmatprep.subr.mxu0 0.0
        %630 = vmatpush1.msra.mxu0 0.0
        %631 = vmatprep.subr.mxu0 0.0
        %632 = vmatpush1.msra.mxu0 0.0
        %633 = vmatprep.subr.mxu0 0.0
        %634 = vmatpush1.msra.mxu0 0.0
        %635 = vmatprep.subr.mxu0 0.0
        %636 = vmatpush1.msra.mxu0 0.0
        %637 = vmatprep.mubr.f32.mxu0 0.0
        %638 = vmatmul.mubr.f32.gmra.mrb[0].mxu0 %v571
        %v639 = vpop.f32.mrb[0].mxu0
        %v640 = vadd.f32 %v568, %v639
        %v641 = vpop.f32.mrb[0].mxu0
        %642 = vdwg.mxu0
        %v643 = vmax.f32 %v640, 0.0
        %s644 = scalar_lea.vmem [#allocation5], 32
        %v645 = vld [vmem:[%s644] sm:$0xff]
        %v646 = vld [vmem:[%s644 + $0x8] sm:$0xff]
        %v647 = vld [vmem:[%s644 + $0x10] sm:$0xff]
        %v648 = vld [vmem:[%s644 + $0x18] sm:$0xff]
        %s649 = scalar_lea.vmem %s2, 1
        %v650 = vld [vmem:[%s649] sm:$0x1]
        %s651 = scalar_lea.vmem [#allocation7], 32
        %v652 = vld [vmem:[%s651] sm:$0xff]
        %v653 = vld [vmem:[%s651 + $0x8] sm:$0xff]
        %v654 = vld [vmem:[%s651 + $0x10] sm:$0xff]
        %v655 = vld [vmem:[%s651 + $0x18] sm:$0xff]
        %s656 = scalar_lea.vmem %s4, 1
        %v657 = vld [vmem:[%s656] sm:$0x1]
        %v659 = vlaneseq
        %v660 = vshrl.u32 %v659, 7
        %v661 = vsub.s32 0, %v660
        %v662 = vrot.slane %v650, %v661
        %v665 = vsel %vm285, %v643, 0
        %667 = vmatprep.subr.mxu0 0.0
        %668 = vmatpush1.msra.mxu0 %v645
        %669 = vmatprep.subr.mxu0 0.0
        %670 = vmatpush1.msra.mxu0 %v646
        %671 = vmatprep.subr.mxu0 0.0
        %672 = vmatpush1.msra.mxu0 %v647
        %673 = vmatprep.subr.mxu0 0.0
        %674 = vmatpush1.msra.mxu0 %v648
        %675 = vmatprep.subr.mxu0 0.0
        %676 = vmatpush1.msra.mxu0 0.0
        %677 = vmatprep.subr.mxu0 0.0
        %678 = vmatpush1.msra.mxu0 0.0
        %679 = vmatprep.subr.mxu0 0.0
        %680 = vmatpush1.msra.mxu0 0.0
        %681 = vmatprep.subr.mxu0 0.0
        %682 = vmatpush1.msra.mxu0 0.0
        %683 = vmatprep.subr.mxu0 0.0
        %684 = vmatpush1.msra.mxu0 0.0
        %685 = vmatprep.subr.mxu0 0.0
        %686 = vmatpush1.msra.mxu0 0.0
        %687 = vmatprep.subr.mxu0 0.0
        %688 = vmatpush1.msra.mxu0 0.0
        %689 = vmatprep.subr.mxu0 0.0
        %690 = vmatpush1.msra.mxu0 0.0
        %691 = vmatprep.subr.mxu0 0.0
        %692 = vmatpush1.msra.mxu0 0.0
        %693 = vmatprep.subr.mxu0 0.0
        %694 = vmatpush1.msra.mxu0 0.0
        %695 = vmatprep.subr.mxu0 0.0
        %696 = vmatpush1.msra.mxu0 0.0
        %697 = vmatprep.subr.mxu0 0.0
        %698 = vmatpush1.msra.mxu0 0.0
        %699 = vmatprep.subr.mxu0 0.0
        %700 = vmatpush1.msra.mxu0 0.0
        %701 = vmatprep.subr.mxu0 0.0
        %702 = vmatpush1.msra.mxu0 0.0
        %703 = vmatprep.subr.mxu0 0.0
        %704 = vmatpush1.msra.mxu0 0.0
        %705 = vmatprep.subr.mxu0 0.0
        %706 = vmatpush1.msra.mxu0 0.0
        %707 = vmatprep.subr.mxu0 0.0
        %708 = vmatpush1.msra.mxu0 0.0
        %709 = vmatprep.subr.mxu0 0.0
        %710 = vmatpush1.msra.mxu0 0.0
        %711 = vmatprep.subr.mxu0 0.0
        %712 = vmatpush1.msra.mxu0 0.0
        %713 = vmatprep.subr.mxu0 0.0
        %714 = vmatpush1.msra.mxu0 0.0
        %715 = vmatprep.subr.mxu0 0.0
        %716 = vmatpush1.msra.mxu0 0.0
        %717 = vmatprep.subr.mxu0 0.0
        %718 = vmatpush1.msra.mxu0 0.0
        %719 = vmatprep.subr.mxu0 0.0
        %720 = vmatpush1.msra.mxu0 0.0
        %721 = vmatprep.subr.mxu0 0.0
        %722 = vmatpush1.msra.mxu0 0.0
        %723 = vmatprep.subr.mxu0 0.0
        %724 = vmatpush1.msra.mxu0 0.0
        %725 = vmatprep.subr.mxu0 0.0
        %726 = vmatpush1.msra.mxu0 0.0
        %727 = vmatprep.subr.mxu0 0.0
        %728 = vmatpush1.msra.mxu0 0.0
        %729 = vmatprep.subr.mxu0 0.0
        %730 = vmatpush1.msra.mxu0 0.0
        %731 = vmatprep.mubr.f32.mxu0 0.0
        %732 = vmatmul.mubr.f32.gmra.mrb[0].mxu0 %v665
        %v733 = vpop.f32.mrb[0].mxu0
        %v734 = vadd.f32 %v662, %v733
        %v735 = vpop.f32.mrb[0].mxu0
        %736 = vdwg.mxu0
        %738 = vrot.lane.b32.xlu0 %v734, 96
        %v739 = vpop.permute.xlu0 %738
        %v740 = vsel %vm285, %v734, 0
        %v742 = vsel %vm285, %v739, 0
        %744 = vmatprep.subr.mxu0 0.0
        %745 = vmatpush1.xpose.msra.mxu0 %v742
        %746 = vmatprep.subr.mxu0 0.0
        %747 = vmatpush1.xpose.msra.mxu0 0.0
        %748 = vmatprep.subr.mxu0 0.0
        %749 = vmatpush1.xpose.msra.mxu0 0.0
        %750 = vmatprep.subr.mxu0 0.0
        %751 = vmatpush1.xpose.msra.mxu0 0.0
        %752 = vmatprep.subr.mxu0 0.0
        %753 = vmatpush1.xpose.msra.mxu0 0.0
        %754 = vmatprep.subr.mxu0 0.0
        %755 = vmatpush1.xpose.msra.mxu0 0.0
        %756 = vmatprep.subr.mxu0 0.0
        %757 = vmatpush1.xpose.msra.mxu0 0.0
        %758 = vmatprep.subr.mxu0 0.0
        %759 = vmatpush1.xpose.msra.mxu0 0.0
        %760 = vmatprep.subr.mxu0 0.0
        %761 = vmatpush1.xpose.msra.mxu0 0.0
        %762 = vmatprep.subr.mxu0 0.0
        %763 = vmatpush1.xpose.msra.mxu0 0.0
        %764 = vmatprep.subr.mxu0 0.0
        %765 = vmatpush1.xpose.msra.mxu0 0.0
        %766 = vmatprep.subr.mxu0 0.0
        %767 = vmatpush1.xpose.msra.mxu0 0.0
        %768 = vmatprep.subr.mxu0 0.0
        %769 = vmatpush1.xpose.msra.mxu0 0.0
        %770 = vmatprep.subr.mxu0 0.0
        %771 = vmatpush1.xpose.msra.mxu0 0.0
        %772 = vmatprep.subr.mxu0 0.0
        %773 = vmatpush1.xpose.msra.mxu0 0.0
        %774 = vmatprep.subr.mxu0 0.0
        %775 = vmatpush1.xpose.msra.mxu0 0.0
        %776 = vmatprep.subr.mxu0 0.0
        %777 = vmatpush1.xpose.msra.mxu0 0.0
        %778 = vmatprep.subr.mxu0 0.0
        %779 = vmatpush1.xpose.msra.mxu0 0.0
        %780 = vmatprep.subr.mxu0 0.0
        %781 = vmatpush1.xpose.msra.mxu0 0.0
        %782 = vmatprep.subr.mxu0 0.0
        %783 = vmatpush1.xpose.msra.mxu0 0.0
        %784 = vmatprep.subr.mxu0 0.0
        %785 = vmatpush1.xpose.msra.mxu0 0.0
        %786 = vmatprep.subr.mxu0 0.0
        %787 = vmatpush1.xpose.msra.mxu0 0.0
        %788 = vmatprep.subr.mxu0 0.0
        %789 = vmatpush1.xpose.msra.mxu0 0.0
        %790 = vmatprep.subr.mxu0 0.0
        %791 = vmatpush1.xpose.msra.mxu0 0.0
        %792 = vmatprep.subr.mxu0 0.0
        %793 = vmatpush1.xpose.msra.mxu0 0.0
        %794 = vmatprep.subr.mxu0 0.0
        %795 = vmatpush1.xpose.msra.mxu0 0.0
        %796 = vmatprep.subr.mxu0 0.0
        %797 = vmatpush1.xpose.msra.mxu0 0.0
        %798 = vmatprep.subr.mxu0 0.0
        %799 = vmatpush1.xpose.msra.mxu0 0.0
        %800 = vmatprep.subr.mxu0 0.0
        %801 = vmatpush1.xpose.msra.mxu0 0.0
        %802 = vmatprep.subr.mxu0 0.0
        %803 = vmatpush1.xpose.msra.mxu0 0.0
        %804 = vmatprep.subr.mxu0 0.0
        %805 = vmatpush1.xpose.msra.mxu0 0.0
        %806 = vmatprep.subr.mxu0 0.0
        %807 = vmatpush1.xpose.msra.mxu0 0.0
        %808 = vmatprep.mubr.f32.mxu0 0.0
        %809 = vmatmul.mubr.f32.gmra.mrb[0].mxu0 %v740
        %v810 = vpop.f32.mrb[0].mxu0
        %v811 = vadd.f32 0.0, %v810
        %v812 = vpop.f32.mrb[0].mxu0
        %813 = vdwg.mxu0
        %v814 = vsel %vm436, %v811, -inf
        %v815 = vrot.slane %v814, 4
        %v816 = vmax.f32 %v814, %v815
        %v817 = vrot.slane %v816, 2
        %v818 = vmax.f32 %v816, %v817
        %v819 = vrot.slane %v818, 1
        %v820 = vmax.f32 %v818, %v819
        %v821 = vsub.f32 %v811, %v820
        %v822 = vmul.f32 %v821, 1.442695
        %v823 = vpow.pop %v822
        %v824 = vsel %vm436, %v823, 0.0
        %v825 = vrot.slane %v824, 4
        %v826 = vadd.f32 %v824, %v825
        %v827 = vrot.slane %v826, 2
        %v828 = vadd.f32 %v826, %v827
        %v829 = vrot.slane %v828, 1
        %v830 = vadd.f32 %v828, %v829
        %v831 = vrcp.pop %v830
        %v832 = vmul.f32 %v823, %v831
        %833 = vxpose.xlu0.b32.start [1/16] %v832, 128
        %834 = vxpose.xlu0.b32.cont [2/16] 0.0, 128
        %835 = vxpose.xlu0.b32.cont [3/16] 0.0, 128
        %836 = vxpose.xlu0.b32.cont [4/16] 0.0, 128
        %837 = vxpose.xlu0.b32.cont [5/16] 0.0, 128
        %838 = vxpose.xlu0.b32.cont [6/16] 0.0, 128
        %839 = vxpose.xlu0.b32.cont [7/16] 0.0, 128
        %840 = vxpose.xlu0.b32.cont [8/16] 0.0, 128
        %841 = vxpose.xlu0.b32.cont [9/16] 0.0, 128
        %842 = vxpose.xlu0.b32.cont [10/16] 0.0, 128
        %843 = vxpose.xlu0.b32.cont [11/16] 0.0, 128
        %844 = vxpose.xlu0.b32.cont [12/16] 0.0, 128
        %845 = vxpose.xlu0.b32.cont [13/16] 0.0, 128
        %846 = vxpose.xlu0.b32.cont [14/16] 0.0, 128
        %847 = vxpose.xlu0.b32.cont [15/16] 0.0, 128
        %848 = vxpose.xlu0.b32.end [16/16] 0.0, 128
        %v849 = vpop.trf.xlu0
        %v850 = vpop.trf.xlu0
        %v851 = vpop.trf.xlu0
        %v852 = vpop.trf.xlu0
        %v853 = vpop.trf.xlu0
        %v854 = vpop.trf.xlu0
        %v855 = vpop.trf.xlu0
        %v856 = vpop.trf.xlu0
        %v857 = vpop.trf.xlu0
        %v858 = vpop.trf.xlu0
        %v859 = vpop.trf.xlu0
        %v860 = vpop.trf.xlu0
        %v861 = vpop.trf.xlu0
        %v862 = vpop.trf.xlu0
        %v863 = vpop.trf.xlu0
        %v864 = vpop.trf.xlu0
        %865 = vrot.lane.b32.xlu0 %v734, 64
        %v866 = vpop.permute.xlu0 %865
        %v869 = vsel %vm436, %v849, 0
        %871 = vmatprep.subr.mxu0 0.0
        %872 = vmatpush1.msra.mxu0 %v866
        %873 = vmatprep.subr.mxu0 0.0
        %874 = vmatpush1.msra.mxu0 0.0
        %875 = vmatprep.subr.mxu0 0.0
        %876 = vmatpush1.msra.mxu0 0.0
        %877 = vmatprep.subr.mxu0 0.0
        %878 = vmatpush1.msra.mxu0 0.0
        %879 = vmatprep.subr.mxu0 0.0
        %880 = vmatpush1.msra.mxu0 0.0
        %881 = vmatprep.subr.mxu0 0.0
        %882 = vmatpush1.msra.mxu0 0.0
        %883 = vmatprep.subr.mxu0 0.0
        %884 = vmatpush1.msra.mxu0 0.0
        %885 = vmatprep.subr.mxu0 0.0
        %886 = vmatpush1.msra.mxu0 0.0
        %887 = vmatprep.subr.mxu0 0.0
        %888 = vmatpush1.msra.mxu0 0.0
        %889 = vmatprep.subr.mxu0 0.0
        %890 = vmatpush1.msra.mxu0 0.0
        %891 = vmatprep.subr.mxu0 0.0
        %892 = vmatpush1.msra.mxu0 0.0
        %893 = vmatprep.subr.mxu0 0.0
        %894 = vmatpush1.msra.mxu0 0.0
        %895 = vmatprep.subr.mxu0 0.0
        %896 = vmatpush1.msra.mxu0 0.0
        %897 = vmatprep.subr.mxu0 0.0
        %898 = vmatpush1.msra.mxu0 0.0
        %899 = vmatprep.subr.mxu0 0.0
        %900 = vmatpush1.msra.mxu0 0.0
        %901 = vmatprep.subr.mxu0 0.0
        %902 = vmatpush1.msra.mxu0 0.0
        %903 = vmatprep.subr.mxu0 0.0
        %904 = vmatpush1.msra.mxu0 0.0
        %905 = vmatprep.subr.mxu0 0.0
        %906 = vmatpush1.msra.mxu0 0.0
        %907 = vmatprep.subr.mxu0 0.0
        %908 = vmatpush1.msra.mxu0 0.0
        %909 = vmatprep.subr.mxu0 0.0
        %910 = vmatpush1.msra.mxu0 0.0
        %911 = vmatprep.subr.mxu0 0.0
        %912 = vmatpush1.msra.mxu0 0.0
        %913 = vmatprep.subr.mxu0 0.0
        %914 = vmatpush1.msra.mxu0 0.0
        %915 = vmatprep.subr.mxu0 0.0
        %916 = vmatpush1.msra.mxu0 0.0
        %917 = vmatprep.subr.mxu0 0.0
        %918 = vmatpush1.msra.mxu0 0.0
        %919 = vmatprep.subr.mxu0 0.0
        %920 = vmatpush1.msra.mxu0 0.0
        %921 = vmatprep.subr.mxu0 0.0
        %922 = vmatpush1.msra.mxu0 0.0
        %923 = vmatprep.subr.mxu0 0.0
        %924 = vmatpush1.msra.mxu0 0.0
        %925 = vmatprep.subr.mxu0 0.0
        %926 = vmatpush1.msra.mxu0 0.0
        %927 = vmatprep.subr.mxu0 0.0
        %928 = vmatpush1.msra.mxu0 0.0
        %929 = vmatprep.subr.mxu0 0.0
        %930 = vmatpush1.msra.mxu0 0.0
        %931 = vmatprep.subr.mxu0 0.0
        %932 = vmatpush1.msra.mxu0 0.0
        %933 = vmatprep.subr.mxu0 0.0
        %934 = vmatpush1.msra.mxu0 0.0
        %935 = vmatprep.mubr.f32.mxu0 0.0
        %936 = vmatmul.mubr.f32.gmra.mrb[0].mxu0 %v869
        %v937 = vpop.f32.mrb[0].mxu0
        %v938 = vadd.f32 0.0, %v937
        %v939 = vpop.f32.mrb[0].mxu0
        %940 = vdwg.mxu0
        %v942 = vlaneseq
        %v943 = vshrl.u32 %v942, 7
        %v944 = vsub.s32 0, %v943
        %v945 = vrot.slane %v657, %v944
        %v948 = vsel %vm285, %v938, 0
        %950 = vmatprep.subr.mxu0 0.0
        %951 = vmatpush1.msra.mxu0 %v652
        %952 = vmatprep.subr.mxu0 0.0
        %953 = vmatpush1.msra.mxu0 %v653
        %954 = vmatprep.subr.mxu0 0.0
        %955 = vmatpush1.msra.mxu0 %v654
        %956 = vmatprep.subr.mxu0 0.0
        %957 = vmatpush1.msra.mxu0 %v655
        %958 = vmatprep.subr.mxu0 0.0
        %959 = vmatpush1.msra.mxu0 0.0
        %960 = vmatprep.subr.mxu0 0.0
        %961 = vmatpush1.msra.mxu0 0.0
        %962 = vmatprep.subr.mxu0 0.0
        %963 = vmatpush1.msra.mxu0 0.0
        %964 = vmatprep.subr.mxu0 0.0
        %965 = vmatpush1.msra.mxu0 0.0
        %966 = vmatprep.subr.mxu0 0.0
        %967 = vmatpush1.msra.mxu0 0.0
        %968 = vmatprep.subr.mxu0 0.0
        %969 = vmatpush1.msra.mxu0 0.0
        %970 = vmatprep.subr.mxu0 0.0
        %971 = vmatpush1.msra.mxu0 0.0
        %972 = vmatprep.subr.mxu0 0.0
        %973 = vmatpush1.msra.mxu0 0.0
        %974 = vmatprep.subr.mxu0 0.0
        %975 = vmatpush1.msra.mxu0 0.0
        %976 = vmatprep.subr.mxu0 0.0
        %977 = vmatpush1.msra.mxu0 0.0
        %978 = vmatprep.subr.mxu0 0.0
        %979 = vmatpush1.msra.mxu0 0.0
        %980 = vmatprep.subr.mxu0 0.0
        %981 = vmatpush1.msra.mxu0 0.0
        %982 = vmatprep.subr.mxu0 0.0
        %983 = vmatpush1.msra.mxu0 0.0
        %984 = vmatprep.subr.mxu0 0.0
        %985 = vmatpush1.msra.mxu0 0.0
        %986 = vmatprep.subr.mxu0 0.0
        %987 = vmatpush1.msra.mxu0 0.0
        %988 = vmatprep.subr.mxu0 0.0
        %989 = vmatpush1.msra.mxu0 0.0
        %990 = vmatprep.subr.mxu0 0.0
        %991 = vmatpush1.msra.mxu0 0.0
        %992 = vmatprep.subr.mxu0 0.0
        %993 = vmatpush1.msra.mxu0 0.0
        %994 = vmatprep.subr.mxu0 0.0
        %995 = vmatpush1.msra.mxu0 0.0
        %996 = vmatprep.subr.mxu0 0.0
        %997 = vmatpush1.msra.mxu0 0.0
        %998 = vmatprep.subr.mxu0 0.0
        %999 = vmatpush1.msra.mxu0 0.0
        %1000 = vmatprep.subr.mxu0 0.0
        %1001 = vmatpush1.msra.mxu0 0.0
        %1002 = vmatprep.subr.mxu0 0.0
        %1003 = vmatpush1.msra.mxu0 0.0
        %1004 = vmatprep.subr.mxu0 0.0
        %1005 = vmatpush1.msra.mxu0 0.0
        %1006 = vmatprep.subr.mxu0 0.0
        %1007 = vmatpush1.msra.mxu0 0.0
        %1008 = vmatprep.subr.mxu0 0.0
        %1009 = vmatpush1.msra.mxu0 0.0
        %1010 = vmatprep.subr.mxu0 0.0
        %1011 = vmatpush1.msra.mxu0 0.0
        %1012 = vmatprep.subr.mxu0 0.0
        %1013 = vmatpush1.msra.mxu0 0.0
        %1014 = vmatprep.mubr.f32.mxu0 0.0
        %1015 = vmatmul.mubr.f32.gmra.mrb[0].mxu0 %v948
        %v1016 = vpop.f32.mrb[0].mxu0
        %v1017 = vadd.f32 %v945, %v1016
        %v1018 = vpop.f32.mrb[0].mxu0
        %1019 = vdwg.mxu0
        %v1020 = vmax.f32 %v1017, 0.0
        %s1021 = scalar_lea.vmem [#allocation5], 64
        %v1022 = vld [vmem:[%s1021] sm:$0xff]
        %v1023 = vld [vmem:[%s1021 + $0x8] sm:$0xff]
        %v1024 = vld [vmem:[%s1021 + $0x10] sm:$0xff]
        %v1025 = vld [vmem:[%s1021 + $0x18] sm:$0xff]
        %s1026 = scalar_lea.vmem %s2, 2
        %v1027 = vld [vmem:[%s1026] sm:$0x1]
        %s1028 = scalar_lea.vmem [#allocation7], 64
        %v1029 = vld [vmem:[%s1028] sm:$0xff]
        %v1030 = vld [vmem:[%s1028 + $0x8] sm:$0xff]
        %v1031 = vld [vmem:[%s1028 + $0x10] sm:$0xff]
        %v1032 = vld [vmem:[%s1028 + $0x18] sm:$0xff]
        %s1033 = scalar_lea.vmem %s4, 2
        %v1034 = vld [vmem:[%s1033] sm:$0x1]
        %v1036 = vlaneseq
        %v1037 = vshrl.u32 %v1036, 7
        %v1038 = vsub.s32 0, %v1037
        %v1039 = vrot.slane %v1027, %v1038
        %v1042 = vsel %vm285, %v1020, 0
        %1044 = vmatprep.subr.mxu0 0.0
        %1045 = vmatpush1.msra.mxu0 %v1022
        %1046 = vmatprep.subr.mxu0 0.0
        %1047 = vmatpush1.msra.mxu0 %v1023
        %1048 = vmatprep.subr.mxu0 0.0
        %1049 = vmatpush1.msra.mxu0 %v1024
        %1050 = vmatprep.subr.mxu0 0.0
        %1051 = vmatpush1.msra.mxu0 %v1025
        %1052 = vmatprep.subr.mxu0 0.0
        %1053 = vmatpush1.msra.mxu0 0.0
        %1054 = vmatprep.subr.mxu0 0.0
        %1055 = vmatpush1.msra.mxu0 0.0
        %1056 = vmatprep.subr.mxu0 0.0
        %1057 = vmatpush1.msra.mxu0 0.0
        %1058 = vmatprep.subr.mxu0 0.0
        %1059 = vmatpush1.msra.mxu0 0.0
        %1060 = vmatprep.subr.mxu0 0.0
        %1061 = vmatpush1.msra.mxu0 0.0
        %1062 = vmatprep.subr.mxu0 0.0
        %1063 = vmatpush1.msra.mxu0 0.0
        %1064 = vmatprep.subr.mxu0 0.0
        %1065 = vmatpush1.msra.mxu0 0.0
        %1066 = vmatprep.subr.mxu0 0.0
        %1067 = vmatpush1.msra.mxu0 0.0
        %1068 = vmatprep.subr.mxu0 0.0
        %1069 = vmatpush1.msra.mxu0 0.0
        %1070 = vmatprep.subr.mxu0 0.0
        %1071 = vmatpush1.msra.mxu0 0.0
        %1072 = vmatprep.subr.mxu0 0.0
        %1073 = vmatpush1.msra.mxu0 0.0
        %1074 = vmatprep.subr.mxu0 0.0
        %1075 = vmatpush1.msra.mxu0 0.0
        %1076 = vmatprep.subr.mxu0 0.0
        %1077 = vmatpush1.msra.mxu0 0.0
        %1078 = vmatprep.subr.mxu0 0.0
        %1079 = vmatpush1.msra.mxu0 0.0
        %1080 = vmatprep.subr.mxu0 0.0
        %1081 = vmatpush1.msra.mxu0 0.0
        %1082 = vmatprep.subr.mxu0 0.0
        %1083 = vmatpush1.msra.mxu0 0.0
        %1084 = vmatprep.subr.mxu0 0.0
        %1085 = vmatpush1.msra.mxu0 0.0
        %1086 = vmatprep.subr.mxu0 0.0
        %1087 = vmatpush1.msra.mxu0 0.0
        %1088 = vmatprep.subr.mxu0 0.0
        %1089 = vmatpush1.msra.mxu0 0.0
        %1090 = vmatprep.subr.mxu0 0.0
        %1091 = vmatpush1.msra.mxu0 0.0
        %1092 = vmatprep.subr.mxu0 0.0
        %1093 = vmatpush1.msra.mxu0 0.0
        %1094 = vmatprep.subr.mxu0 0.0
        %1095 = vmatpush1.msra.mxu0 0.0
        %1096 = vmatprep.subr.mxu0 0.0
        %1097 = vmatpush1.msra.mxu0 0.0
        %1098 = vmatprep.subr.mxu0 0.0
        %1099 = vmatpush1.msra.mxu0 0.0
        %1100 = vmatprep.subr.mxu0 0.0
        %1101 = vmatpush1.msra.mxu0 0.0
        %1102 = vmatprep.subr.mxu0 0.0
        %1103 = vmatpush1.msra.mxu0 0.0
        %1104 = vmatprep.subr.mxu0 0.0
        %1105 = vmatpush1.msra.mxu0 0.0
        %1106 = vmatprep.subr.mxu0 0.0
        %1107 = vmatpush1.msra.mxu0 0.0
        %1108 = vmatprep.mubr.f32.mxu0 0.0
        %1109 = vmatmul.mubr.f32.gmra.mrb[0].mxu0 %v1042
        %v1110 = vpop.f32.mrb[0].mxu0
        %v1111 = vadd.f32 %v1039, %v1110
        %v1112 = vpop.f32.mrb[0].mxu0
        %1113 = vdwg.mxu0
        %1115 = vrot.lane.b32.xlu0 %v1111, 96
        %v1116 = vpop.permute.xlu0 %1115
        %v1117 = vsel %vm285, %v1111, 0
        %v1119 = vsel %vm285, %v1116, 0
        %1121 = vmatprep.subr.mxu0 0.0
        %1122 = vmatpush1.xpose.msra.mxu0 %v1119
        %1123 = vmatprep.subr.mxu0 0.0
        %1124 = vmatpush1.xpose.msra.mxu0 0.0
        %1125 = vmatprep.subr.mxu0 0.0
        %1126 = vmatpush1.xpose.msra.mxu0 0.0
        %1127 = vmatprep.subr.mxu0 0.0
        %1128 = vmatpush1.xpose.msra.mxu0 0.0
        %1129 = vmatprep.subr.mxu0 0.0
        %1130 = vmatpush1.xpose.msra.mxu0 0.0
        %1131 = vmatprep.subr.mxu0 0.0
        %1132 = vmatpush1.xpose.msra.mxu0 0.0
        %1133 = vmatprep.subr.mxu0 0.0
        %1134 = vmatpush1.xpose.msra.mxu0 0.0
        %1135 = vmatprep.subr.mxu0 0.0
        %1136 = vmatpush1.xpose.msra.mxu0 0.0
        %1137 = vmatprep.subr.mxu0 0.0
        %1138 = vmatpush1.xpose.msra.mxu0 0.0
        %1139 = vmatprep.subr.mxu0 0.0
        %1140 = vmatpush1.xpose.msra.mxu0 0.0
        %1141 = vmatprep.subr.mxu0 0.0
        %1142 = vmatpush1.xpose.msra.mxu0 0.0
        %1143 = vmatprep.subr.mxu0 0.0
        %1144 = vmatpush1.xpose.msra.mxu0 0.0
        %1145 = vmatprep.subr.mxu0 0.0
        %1146 = vmatpush1.xpose.msra.mxu0 0.0
        %1147 = vmatprep.subr.mxu0 0.0
        %1148 = vmatpush1.xpose.msra.mxu0 0.0
        %1149 = vmatprep.subr.mxu0 0.0
        %1150 = vmatpush1.xpose.msra.mxu0 0.0
        %1151 = vmatprep.subr.mxu0 0.0
        %1152 = vmatpush1.xpose.msra.mxu0 0.0
        %1153 = vmatprep.subr.mxu0 0.0
        %1154 = vmatpush1.xpose.msra.mxu0 0.0
        %1155 = vmatprep.subr.mxu0 0.0
        %1156 = vmatpush1.xpose.msra.mxu0 0.0
        %1157 = vmatprep.subr.mxu0 0.0
        %1158 = vmatpush1.xpose.msra.mxu0 0.0
        %1159 = vmatprep.subr.mxu0 0.0
        %1160 = vmatpush1.xpose.msra.mxu0 0.0
        %1161 = vmatprep.subr.mxu0 0.0
        %1162 = vmatpush1.xpose.msra.mxu0 0.0
        %1163 = vmatprep.subr.mxu0 0.0
        %1164 = vmatpush1.xpose.msra.mxu0 0.0
        %1165 = vmatprep.subr.mxu0 0.0
        %1166 = vmatpush1.xpose.msra.mxu0 0.0
        %1167 = vmatprep.subr.mxu0 0.0
        %1168 = vmatpush1.xpose.msra.mxu0 0.0
        %1169 = vmatprep.subr.mxu0 0.0
        %1170 = vmatpush1.xpose.msra.mxu0 0.0
        %1171 = vmatprep.subr.mxu0 0.0
        %1172 = vmatpush1.xpose.msra.mxu0 0.0
        %1173 = vmatprep.subr.mxu0 0.0
        %1174 = vmatpush1.xpose.msra.mxu0 0.0
        %1175 = vmatprep.subr.mxu0 0.0
        %1176 = vmatpush1.xpose.msra.mxu0 0.0
        %1177 = vmatprep.subr.mxu0 0.0
        %1178 = vmatpush1.xpose.msra.mxu0 0.0
        %1179 = vmatprep.subr.mxu0 0.0
        %1180 = vmatpush1.xpose.msra.mxu0 0.0
        %1181 = vmatprep.subr.mxu0 0.0
        %1182 = vmatpush1.xpose.msra.mxu0 0.0
        %1183 = vmatprep.subr.mxu0 0.0
        %1184 = vmatpush1.xpose.msra.mxu0 0.0
        %1185 = vmatprep.mubr.f32.mxu0 0.0
        %1186 = vmatmul.mubr.f32.gmra.mrb[0].mxu0 %v1117
        %v1187 = vpop.f32.mrb[0].mxu0
        %v1188 = vadd.f32 0.0, %v1187
        %v1189 = vpop.f32.mrb[0].mxu0
        %1190 = vdwg.mxu0
        %v1191 = vsel %vm436, %v1188, -inf
        %v1192 = vrot.slane %v1191, 4
        %v1193 = vmax.f32 %v1191, %v1192
        %v1194 = vrot.slane %v1193, 2
        %v1195 = vmax.f32 %v1193, %v1194
        %v1196 = vrot.slane %v1195, 1
        %v1197 = vmax.f32 %v1195, %v1196
        %v1198 = vsub.f32 %v1188, %v1197
        %v1199 = vmul.f32 %v1198, 1.442695
        %v1200 = vpow.pop %v1199
        %v1201 = vsel %vm436, %v1200, 0.0
        %v1202 = vrot.slane %v1201, 4
        %v1203 = vadd.f32 %v1201, %v1202
        %v1204 = vrot.slane %v1203, 2
        %v1205 = vadd.f32 %v1203, %v1204
        %v1206 = vrot.slane %v1205, 1
        %v1207 = vadd.f32 %v1205, %v1206
        %v1208 = vrcp.pop %v1207
        %v1209 = vmul.f32 %v1200, %v1208
        %1210 = vxpose.xlu0.b32.start [1/16] %v1209, 128
        %1211 = vxpose.xlu0.b32.cont [2/16] 0.0, 128
        %1212 = vxpose.xlu0.b32.cont [3/16] 0.0, 128
        %1213 = vxpose.xlu0.b32.cont [4/16] 0.0, 128
        %1214 = vxpose.xlu0.b32.cont [5/16] 0.0, 128
        %1215 = vxpose.xlu0.b32.cont [6/16] 0.0, 128
        %1216 = vxpose.xlu0.b32.cont [7/16] 0.0, 128
        %1217 = vxpose.xlu0.b32.cont [8/16] 0.0, 128
        %1218 = vxpose.xlu0.b32.cont [9/16] 0.0, 128
        %1219 = vxpose.xlu0.b32.cont [10/16] 0.0, 128
        %1220 = vxpose.xlu0.b32.cont [11/16] 0.0, 128
        %1221 = vxpose.xlu0.b32.cont [12/16] 0.0, 128
        %1222 = vxpose.xlu0.b32.cont [13/16] 0.0, 128
        %1223 = vxpose.xlu0.b32.cont [14/16] 0.0, 128
        %1224 = vxpose.xlu0.b32.cont [15/16] 0.0, 128
        %1225 = vxpose.xlu0.b32.end [16/16] 0.0, 128
        %v1226 = vpop.trf.xlu0
        %v1227 = vpop.trf.xlu0
        %v1228 = vpop.trf.xlu0
        %v1229 = vpop.trf.xlu0
        %v1230 = vpop.trf.xlu0
        %v1231 = vpop.trf.xlu0
        %v1232 = vpop.trf.xlu0
        %v1233 = vpop.trf.xlu0
        %v1234 = vpop.trf.xlu0
        %v1235 = vpop.trf.xlu0
        %v1236 = vpop.trf.xlu0
        %v1237 = vpop.trf.xlu0
        %v1238 = vpop.trf.xlu0
        %v1239 = vpop.trf.xlu0
        %v1240 = vpop.trf.xlu0
        %v1241 = vpop.trf.xlu0
        %1242 = vrot.lane.b32.xlu0 %v1111, 64
        %v1243 = vpop.permute.xlu0 %1242
        %v1246 = vsel %vm436, %v1226, 0
        %1248 = vmatprep.subr.mxu0 0.0
        %1249 = vmatpush1.msra.mxu0 %v1243
        %1250 = vmatprep.subr.mxu0 0.0
        %1251 = vmatpush1.msra.mxu0 0.0
        %1252 = vmatprep.subr.mxu0 0.0
        %1253 = vmatpush1.msra.mxu0 0.0
        %1254 = vmatprep.subr.mxu0 0.0
        %1255 = vmatpush1.msra.mxu0 0.0
        %1256 = vmatprep.subr.mxu0 0.0
        %1257 = vmatpush1.msra.mxu0 0.0
        %1258 = vmatprep.subr.mxu0 0.0
        %1259 = vmatpush1.msra.mxu0 0.0
        %1260 = vmatprep.subr.mxu0 0.0
        %1261 = vmatpush1.msra.mxu0 0.0
        %1262 = vmatprep.subr.mxu0 0.0
        %1263 = vmatpush1.msra.mxu0 0.0
        %1264 = vmatprep.subr.mxu0 0.0
        %1265 = vmatpush1.msra.mxu0 0.0
        %1266 = vmatprep.subr.mxu0 0.0
        %1267 = vmatpush1.msra.mxu0 0.0
        %1268 = vmatprep.subr.mxu0 0.0
        %1269 = vmatpush1.msra.mxu0 0.0
        %1270 = vmatprep.subr.mxu0 0.0
        %1271 = vmatpush1.msra.mxu0 0.0
        %1272 = vmatprep.subr.mxu0 0.0
        %1273 = vmatpush1.msra.mxu0 0.0
        %1274 = vmatprep.subr.mxu0 0.0
        %1275 = vmatpush1.msra.mxu0 0.0
        %1276 = vmatprep.subr.mxu0 0.0
        %1277 = vmatpush1.msra.mxu0 0.0
        %1278 = vmatprep.subr.mxu0 0.0
        %1279 = vmatpush1.msra.mxu0 0.0
        %1280 = vmatprep.subr.mxu0 0.0
        %1281 = vmatpush1.msra.mxu0 0.0
        %1282 = vmatprep.subr.mxu0 0.0
        %1283 = vmatpush1.msra.mxu0 0.0
        %1284 = vmatprep.subr.mxu0 0.0
        %1285 = vmatpush1.msra.mxu0 0.0
        %1286 = vmatprep.subr.mxu0 0.0
        %1287 = vmatpush1.msra.mxu0 0.0
        %1288 = vmatprep.subr.mxu0 0.0
        %1289 = vmatpush1.msra.mxu0 0.0
        %1290 = vmatprep.subr.mxu0 0.0
        %1291 = vmatpush1.msra.mxu0 0.0
        %1292 = vmatprep.subr.mxu0 0.0
        %1293 = vmatpush1.msra.mxu0 0.0
        %1294 = vmatprep.subr.mxu0 0.0
        %1295 = vmatpush1.msra.mxu0 0.0
        %1296 = vmatprep.subr.mxu0 0.0
        %1297 = vmatpush1.msra.mxu0 0.0
        %1298 = vmatprep.subr.mxu0 0.0
        %1299 = vmatpush1.msra.mxu0 0.0
        %1300 = vmatprep.subr.mxu0 0.0
        %1301 = vmatpush1.msra.mxu0 0.0
        %1302 = vmatprep.subr.mxu0 0.0
        %1303 = vmatpush1.msra.mxu0 0.0
        %1304 = vmatprep.subr.mxu0 0.0
        %1305 = vmatpush1.msra.mxu0 0.0
        %1306 = vmatprep.subr.mxu0 0.0
        %1307 = vmatpush1.msra.mxu0 0.0
        %1308 = vmatprep.subr.mxu0 0.0
        %1309 = vmatpush1.msra.mxu0 0.0
        %1310 = vmatprep.subr.mxu0 0.0
        %1311 = vmatpush1.msra.mxu0 0.0
        %1312 = vmatprep.mubr.f32.mxu0 0.0
        %1313 = vmatmul.mubr.f32.gmra.mrb[0].mxu0 %v1246
        %v1314 = vpop.f32.mrb[0].mxu0
        %v1315 = vadd.f32 0.0, %v1314
        %v1316 = vpop.f32.mrb[0].mxu0
        %1317 = vdwg.mxu0
        %v1319 = vlaneseq
        %v1320 = vshrl.u32 %v1319, 7
        %v1321 = vsub.s32 0, %v1320
        %v1322 = vrot.slane %v1034, %v1321
        %v1325 = vsel %vm285, %v1315, 0
        %1327 = vmatprep.subr.mxu0 0.0
        %1328 = vmatpush1.msra.mxu0 %v1029
        %1329 = vmatprep.subr.mxu0 0.0
        %1330 = vmatpush1.msra.mxu0 %v1030
        %1331 = vmatprep.subr.mxu0 0.0
        %1332 = vmatpush1.msra.mxu0 %v1031
        %1333 = vmatprep.subr.mxu0 0.0
        %1334 = vmatpush1.msra.mxu0 %v1032
        %1335 = vmatprep.subr.mxu0 0.0
        %1336 = vmatpush1.msra.mxu0 0.0
        %1337 = vmatprep.subr.mxu0 0.0
        %1338 = vmatpush1.msra.mxu0 0.0
        %1339 = vmatprep.subr.mxu0 0.0
        %1340 = vmatpush1.msra.mxu0 0.0
        %1341 = vmatprep.subr.mxu0 0.0
        %1342 = vmatpush1.msra.mxu0 0.0
        %1343 = vmatprep.subr.mxu0 0.0
        %1344 = vmatpush1.msra.mxu0 0.0
        %1345 = vmatprep.subr.mxu0 0.0
        %1346 = vmatpush1.msra.mxu0 0.0
        %1347 = vmatprep.subr.mxu0 0.0
        %1348 = vmatpush1.msra.mxu0 0.0
        %1349 = vmatprep.subr.mxu0 0.0
        %1350 = vmatpush1.msra.mxu0 0.0
        %1351 = vmatprep.subr.mxu0 0.0
        %1352 = vmatpush1.msra.mxu0 0.0
        %1353 = vmatprep.subr.mxu0 0.0
        %1354 = vmatpush1.msra.mxu0 0.0
        %1355 = vmatprep.subr.mxu0 0.0
        %1356 = vmatpush1.msra.mxu0 0.0
        %1357 = vmatprep.subr.mxu0 0.0
        %1358 = vmatpush1.msra.mxu0 0.0
        %1359 = vmatprep.subr.mxu0 0.0
        %1360 = vmatpush1.msra.mxu0 0.0
        %1361 = vmatprep.subr.mxu0 0.0
        %1362 = vmatpush1.msra.mxu0 0.0
        %1363 = vmatprep.subr.mxu0 0.0
        %1364 = vmatpush1.msra.mxu0 0.0
        %1365 = vmatprep.subr.mxu0 0.0
        %1366 = vmatpush1.msra.mxu0 0.0
        %1367 = vmatprep.subr.mxu0 0.0
        %1368 = vmatpush1.msra.mxu0 0.0
        %1369 = vmatprep.subr.mxu0 0.0
        %1370 = vmatpush1.msra.mxu0 0.0
        %1371 = vmatprep.subr.mxu0 0.0
        %1372 = vmatpush1.msra.mxu0 0.0
        %1373 = vmatprep.subr.mxu0 0.0
        %1374 = vmatpush1.msra.mxu0 0.0
        %1375 = vmatprep.subr.mxu0 0.0
        %1376 = vmatpush1.msra.mxu0 0.0
        %1377 = vmatprep.subr.mxu0 0.0
        %1378 = vmatpush1.msra.mxu0 0.0
        %1379 = vmatprep.subr.mxu0 0.0
        %1380 = vmatpush1.msra.mxu0 0.0
        %1381 = vmatprep.subr.mxu0 0.0
        %1382 = vmatpush1.msra.mxu0 0.0
        %1383 = vmatprep.subr.mxu0 0.0
        %1384 = vmatpush1.msra.mxu0 0.0
        %1385 = vmatprep.subr.mxu0 0.0
        %1386 = vmatpush1.msra.mxu0 0.0
        %1387 = vmatprep.subr.mxu0 0.0
        %1388 = vmatpush1.msra.mxu0 0.0
        %1389 = vmatprep.subr.mxu0 0.0
        %1390 = vmatpush1.msra.mxu0 0.0
        %1391 = vmatprep.mubr.f32.mxu0 0.0
        %1392 = vmatmul.mubr.f32.gmra.mrb[0].mxu0 %v1325
        %v1393 = vpop.f32.mrb[0].mxu0
        %v1394 = vadd.f32 %v1322, %v1393
        %v1395 = vpop.f32.mrb[0].mxu0
        %1396 = vdwg.mxu0
        %v1397 = vmax.f32 %v1394, 0.0
        %v1398 = vsel %vm285, %v1397, 0.0
        %v1399 = vrot.slane %v1398, 4
        %v1400 = vadd.f32 %v1398, %v1399
        %v1401 = vrot.slane %v1400, 2
        %v1402 = vadd.f32 %v1400, %v1401
        %v1403 = vrot.slane %v1402, 1
        %v1404 = vadd.f32 %v1402, %v1403
        %vm1405 = vcmask 253952
        %1406 = vst.msk [vmem:[%s267] sm:$0x1] %vm1405, %v1404
        %s1407 = sand.u32 %s141, 1
        %s1408 = scalar_lea.sflag [#allocation4], %s1407
        %s1409 = sand.u32 %s141, 1
        %s1410 = scalar_lea.vmem [#allocation8], %s1409
        // Predicated region
        $region53: #{tpu_custom_call.1} parent=39 // pred_check
          %p1411 = pneg %p151
        $region54: #{tpu_custom_call.1} parent=39 // pred_check_branch
          %1413 = sbr.rel (%p1411) target = $region56
        $region55: #{tpu_custom_call.1} parent=39 // pred_region
          %s1415 = ssub.s32 16, 16
          %1416 = vsyncadd %s1408, %s1415
          %s1417 = smul.addr %s23, 16
          %s1418 = scalar_lea.hbm %s5, %s1417
          %s1420 = sshll.u32 %s1410, 4
          %s1421 = int_to_ptr.vmem [resolvable:$true] %s1420
          %1423 = dma.vmem_to_hbm [thread:$0]  %s1421, 16, %s1418, %s1408
        $region56: #{tpu_custom_call.1} parent=39 // pred_fallthru
          _
      $region40: #{tpu_custom_call.1} parent=5 // pred_fallthru
        _
      %p1424 = scmp.le.s32.totalorder 2, %s18
      // Predicated region
      $region57: #{tpu_custom_call.1} parent=5 // pred_check
        %p1425 = pneg %p1424
      $region58: #{tpu_custom_call.1} parent=5 // pred_check_branch
        %1427 = sbr.rel (%p1425) target = $region60
      $region59: #{tpu_custom_call.1} parent=5 // pred_region
        %s1428 = ssub.s32 %s18, 2
        // Predicated region
        $region61: #{tpu_custom_call.1} parent=59 // pred_check
          %p1429 = pneg %p157
        $region62: #{tpu_custom_call.1} parent=59 // pred_check_branch
          %1431 = sbr.rel (%p1429) target = $region64
        $region63: #{tpu_custom_call.1} parent=59 // pred_region
          %s1432 = sand.u32 %s142, 1
          %s1433 = scalar_lea.sflag [#allocation4], %s1432
          %s1434 = sand.u32 %s142, 1
          %s1435 = scalar_lea.vmem [#allocation8], %s1434
          %1436 = dma.done %s1433, 16
        $region64: #{tpu_custom_call.1} parent=59 // pred_fallthru
          _
      $region60: #{tpu_custom_call.1} parent=5 // pred_fallthru
        _
    $region6: #{tpu_custom_call.1} parent=1 // loop_footer
      %s22 = sadd.s32 1, %s18
    $region7: #{tpu_custom_call.1} parent=1 // loop_footer_branch
      %17 = sbr.rel target = $region3
    $region8: #{tpu_custom_call.1} parent=1 // loop_exit
      _
    %1437 = vsyncpa [#allocation3], 1
    %s1438 = scalar_lea.sflag [#allocation3], 1
    %1439 = vsyncpa %s1438, 1
    %1440 = vsyncpa [#allocation6], 1
    %1441 = vsyncpa [#allocation4], 1
    %s1442 = scalar_lea.sflag [#allocation4], 1
    %1443 = vsyncpa %s1442, 1

</llo_original>
